<compile_context>
chip_gen: v6e
topology: v6e:2x2x1
jax: 0.10.0
libtpu: 0.0.40
codegen_flags: <defaults>
</compile_context>

<pallas_src>
import functools

import jax
import jax.numpy as jnp
from jax.experimental import pallas as pl
from jax.experimental.pallas import tpu as pltpu

_BN_EPS = 1e-5
_HIDDEN = 300


def _round_up(n, m):
    return ((n + m - 1) // m) * m


def _vmem():
    return pl.BlockSpec(memory_space=pltpu.MemorySpace.VMEM)


def _smem():
    return pl.BlockSpec(memory_space=pltpu.MemorySpace.SMEM)


def _fused_kernel(xe_ref, xo_ref, sc_ref,
                  w4t_ref, b4_ref, w5t_ref, b5_ref, w6t_ref, b6_ref,
                  o_ref, slab_ref, *, K, C, Lh, B, inv_n):
    """conv1d -> ReLU -> MaxPool1d(2) -> BatchNorm1d (batch stats) -> fc4/ReLU -> fc5/ReLU -> fc6.

    sc_ref (SMEM, 1-D): [conv_w (C*K) | conv_b (C) | bn_gamma (C) | bn_beta (C)]
    slab_ref (VMEM scratch): (Bp, C*Lh) channel-major pooled+BN'd activations (= PyTorch flatten).
    """
    xe = xe_ref[...]          # (Bp, Lh + pad)  even-phase of the padded signal
    xo = xo_ref[...]          # (Bp, Lh + pad)  odd-phase of the padded signal

    # ---- Hoisted polyphase tap views: channel-independent, built once, reused C times.
    taps_e = []               # source slice feeding conv output position 2p,   tap k
    taps_o = []               # source slice feeding conv output position 2p+1, tap k
    for k in range(K):
        m = k // 2
        if k % 2 == 0:
            taps_e.append(xe[:, m:m + Lh])
            taps_o.append(xo[:, m:m + Lh])
        else:
            taps_e.append(xo[:, m:m + Lh])
            taps_o.append(xe[:, m + 1:m + 1 + Lh])

    # Channel loop is pure VPU/XLU work (no MXU).  Python unroll is fine at small C;
    # for C >~ 8 this would become a grid axis / fori_loop to bound live ranges.
    for c in range(C):
        # ---- Conv1d taps for even / odd output positions (VPU FMAs on hoisted views) ----
        acc_e = None
        acc_o = None
        for k in range(K):
            w = sc_ref[c * K + k]
            te = w * taps_e[k]
            to = w * taps_o[k]
            acc_e = te if acc_e is None else acc_e + te
            acc_o = to if acc_o is None else acc_o + to
        # ---- bias, ReLU, MaxPool1d(2)  (ReLU monotone: max/relu commute) ----
        bias = sc_ref[C * K + c]
        p = jnp.maximum(jnp.maximum(acc_e, acc_o) + bias, 0.0)          # (Bp, Lh)

        # ---- BatchNorm1d, one-pass batch statistics over the *valid* rows only ----
        pv = p[:B, :]                                                   # static sublane slice
        s = jnp.sum(jnp.sum(pv, axis=1, keepdims=True), axis=0, keepdims=True)        # (1,1)
        ss = jnp.sum(jnp.sum(pv * pv, axis=1, keepdims=True), axis=0, keepdims=True)  # (1,1)
        mean = s * inv_n
        var = ss * inv_n - mean * mean                                  # biased variance
        gamma = sc_ref[C * K + C + c]
        beta = sc_ref[C * K + 2 * C + c]
        scale = gamma * jax.lax.rsqrt(var + _BN_EPS)                    # (1,1), rsqrt on EUP
        shift = beta - mean * scale                                     # (1,1)

        # ---- write this channel's Lh columns of the channel-major flatten ----
        slab_ref[:, c * Lh:(c + 1) * Lh] = p * scale + shift

    # ---- One deep-K fc4 dot (fills the systolic array) -> ReLU -> fc5/ReLU -> fc6 ----
    a = slab_ref[...].astype(w4t_ref.dtype)                             # bf16 cast if enabled
    h = jnp.dot(a, w4t_ref[...], preferred_element_type=jnp.float32) + b4_ref[...]
    h = jnp.maximum(h, 0.0)
    h = jnp.dot(h.astype(w5t_ref.dtype), w5t_ref[...],
                preferred_element_type=jnp.float32) + b5_ref[...]
    h = jnp.maximum(h, 0.0)
    o_ref[...] = jnp.dot(h.astype(w6t_ref.dtype), w6t_ref[...],
                         preferred_element_type=jnp.float32) + b6_ref[...]


def init_params(key, *, input_shape, kernel_size, channel_size, out_shape):
    """Deterministic PyTorch-like (uniform fan-in) initialization."""
    L, K, C = input_shape, kernel_size, channel_size
    Lh = L // 2
    keys = jax.random.split(key, 8)

    def uni(k, shape, fan_in):
        b = 1.0 / jnp.sqrt(float(fan_in))
        return jax.random.uniform(k, shape, jnp.float32, -b, b)

    wc = uni(keys[0], (C, 1, K), K)              # Conv1d(1, C, K).weight
    bc = uni(keys[1], (C,), K)                   # Conv1d bias
    gamma = jnp.ones((C,), jnp.float32)          # BatchNorm1d weight
    beta = jnp.zeros((C,), jnp.float32)          # BatchNorm1d bias
    w4 = uni(keys[2], (_HIDDEN, C * Lh), C * Lh)
    b4 = uni(keys[3], (_HIDDEN,), C * Lh)
    w5 = uni(keys[4], (_HIDDEN, _HIDDEN), _HIDDEN)
    b5 = uni(keys[5], (_HIDDEN,), _HIDDEN)
    w6 = uni(keys[6], (out_shape, _HIDDEN), _HIDDEN)
    b6 = uni(keys[7], (out_shape,), _HIDDEN)
    return (wc, bc, gamma, beta, w4, b4, w5, b5, w6, b6)


def prepare_packed_params(params, *, input_shape, kernel_size, channel_size, out_shape,
                          mxu_dtype=jnp.float32):
    """One-time packing:
      * conv weight/bias + BN gamma/beta flattened into a single 1-D SMEM array,
      * Linear weights transposed and zero-padded to lane-dense widths (300 -> 384,
        out_shape -> 128) so all MXU operands / the final store are unmasked,
      * optionally cast the MXU weight operands to bf16 (v5e/v6e fast MXU path);
        biases stay f32 and accumulation stays f32 inside the kernel.
    """
    wc, bc, gamma, beta, w4, b4, w5, b5, w6, b6 = params
    C, K = channel_size, kernel_size
    Lh = input_shape // 2
    Hp = _round_up(_HIDDEN, 128)        # 300 -> 384
    Op = _round_up(out_shape, 128)      # out_shape -> 128

    scalars = jnp.concatenate(
        [wc.reshape(C * K), bc, gamma, beta]).astype(jnp.float32)       # 1-D SMEM pack

    w4t = jnp.zeros((C * Lh, Hp), jnp.float32).at[:, :_HIDDEN].set(w4.T)
    b4p = jnp.zeros((1, Hp), jnp.float32).at[:, :_HIDDEN].set(b4)
    w5t = jnp.zeros((Hp, Hp), jnp.float32).at[:_HIDDEN, :_HIDDEN].set(w5.T)
    b5p = jnp.zeros((1, Hp), jnp.float32).at[:, :_HIDDEN].set(b5)
    w6t = jnp.zeros((Hp, Op), jnp.float32).at[:_HIDDEN, :out_shape].set(w6.T)
    b6p = jnp.zeros((1, Op), jnp.float32).at[:, :out_shape].set(b6)
    return dict(scalars=scalars,
                w4t=w4t.astype(mxu_dtype), b4=b4p,
                w5t=w5t.astype(mxu_dtype), b5=b5p,
                w6t=w6t.astype(mxu_dtype), b6=b6p,
                out_pad=Op)


def single_conv_forward(x, packed, *, input_shape, kernel_size, channel_size, out_shape):
    B = x.shape[0]
    L, K, C = input_shape, kernel_size, channel_size
    # Guards: the polyphase mapping assumes 'same' conv (odd K) and exact MaxPool1d(2).
    assert K % 2 == 1, "kernel_size must be odd for PyTorch-'same' Conv1d semantics"
    assert L % 2 == 0, "input_shape must be even for exact MaxPool1d(2)"
    pad = K // 2
    Lh = L // 2
    Bp = _round_up(max(B, 1), 8)        # sublane-dense batch tile

    # PyTorch: x.view(B, 1, input_shape); single input channel -> just (B, L).
    xs = x.reshape(B, L).astype(jnp.float32)
    if Bp != B:
        xs = jnp.pad(xs, ((0, Bp - B), (0, 0)))     # zero rows; BN stats exclude them
    xp = jnp.pad(xs, ((0, 0), (pad, pad)))
    # Polyphase split of the padded signal: stride-2-pooled 'same' conv becomes K
    # contiguous static slices per phase inside the kernel (no im2col, no strided loads).
    xe = xp[:, 0::2]          # (Bp, Lh + pad)
    xo = xp[:, 1::2]          # (Bp, Lh + pad)

    kernel = functools.partial(_fused_kernel, K=K, C=C, Lh=Lh, B=B,
                               inv_n=1.0 / float(B * Lh))
    out = pl.pallas_call(
        kernel,
        out_shape=jax.ShapeDtypeStruct((Bp, packed["out_pad"]), jnp.float32),
        in_specs=[_vmem(), _vmem(),                 # xe, xo
                  _smem(),                          # packed conv/BN scalars
                  _vmem(), _vmem(),                 # w4t, b4
                  _vmem(), _vmem(),                 # w5t, b5
                  _vmem(), _vmem()],                # w6t, b6
        out_specs=_vmem(),
        scratch_shapes=[pltpu.VMEM((Bp, C * Lh), jnp.float32)],   # flatten slab
        # Explicit VMEM budget (v7x has 64 MiB physical / 32 MiB default scoped).
        compiler_params=pltpu.CompilerParams(vmem_limit_bytes=32 * 1024 * 1024),
    )(xe, xo, packed["scalars"], packed["w4t"], packed["b4"],
      packed["w5t"], packed["b5"], packed["w6t"], packed["b6"])
    return out[:B, :out_shape]


def _reference_forward(x, params, *, input_shape, kernel_size, channel_size, out_shape):
    """Pure-JAX reference with the exact PyTorch forward semantics (train-mode BN)."""
    B = x.shape[0]
    L, K, C = input_shape, kernel_size, channel_size
    pad = K // 2
    Lh = L // 2
    wc, bc, gamma, beta, w4, b4, w5, b5, w6, b6 = params
    xs = x.reshape(B, L).astype(jnp.float32)
    xp = jnp.pad(xs, ((0, 0), (pad, pad)))
    idx = jnp.arange(L)[:, None] + jnp.arange(K)[None, :]               # (L, K)
    windows = xp[:, idx]                                                 # (B, L, K)
    y = jnp.einsum("blk,ck->bcl", windows, wc.reshape(C, K)) + bc[None, :, None]
    y = jnp.maximum(y, 0.0)                                              # ReLU
    p = jnp.max(y.reshape(B, C, Lh, 2), axis=-1)                         # MaxPool1d(2)
    mean = jnp.mean(p, axis=(0, 2), keepdims=True)
    var = jnp.mean((p - mean) ** 2, axis=(0, 2), keepdims=True)          # biased variance
    p = (p - mean) * jax.lax.rsqrt(var + _BN_EPS) * gamma[None, :, None] + beta[None, :, None]
    f = p.reshape(B, C * Lh)                                             # channel-major flatten
    h = jnp.maximum(f @ w4.T + b4, 0.0)
    h = jnp.maximum(h @ w5.T + b5, 0.0)
    return h @ w6.T + b6


if __name__ == "__main__":
    # module hyperparameters (small, consistent with SingleConv.__init__)
    INPUT_SHAPE = 16     # L (flattened 1-D signal length)
    KERNEL_SIZE = 3      # odd kernel -> 'same' length conv as in the PyTorch module
    CHANNEL_SIZE = 4     # conv1 channels
    OUT_SHAPE = 8        # n_classes
    BATCH = 2

    hp = dict(input_shape=INPUT_SHAPE, kernel_size=KERNEL_SIZE,
              channel_size=CHANNEL_SIZE, out_shape=OUT_SHAPE)

    key = jax.random.PRNGKey(0)
    k_x, k_p = jax.random.split(key)
    x = jax.random.normal(k_x, (BATCH, INPUT_SHAPE), dtype=jnp.float32)
    params = init_params(k_p, **hp)

    y_ref = jax.block_until_ready(_reference_forward(x, params, **hp))

    # --- f32 MXU-operand path (bit-faithful check against the pure-JAX reference) ---
    packed_f32 = prepare_packed_params(params, mxu_dtype=jnp.float32, **hp)
    y_f32 = jax.block_until_ready(single_conv_forward(x, packed_f32, **hp))
    assert y_f32.shape == (BATCH, OUT_SHAPE)
    assert bool(jnp.allclose(y_f32, y_ref, atol=1e-3, rtol=1e-3)), "f32 mismatch vs reference"

    # --- bf16 MXU-operand path (fast path for v5e/v6e MXU; f32 accumulation kept) ---
    packed_bf16 = prepare_packed_params(params, mxu_dtype=jnp.bfloat16, **hp)
    y_bf16 = jax.block_until_ready(single_conv_forward(x, packed_bf16, **hp))
    assert y_bf16.shape == (BATCH, OUT_SHAPE)
    assert bool(jnp.allclose(y_bf16, y_ref, atol=5e-2, rtol=5e-2)), "bf16 mismatch vs reference"

    print("KERNEL_OK")
</pallas_src>

<mosaic_0001>
module attributes {stable_mosaic.version = 11 : i64} {
  func.func @_fused_kernel(%arg0: memref<8x9xf32, #tpu.memory_space<vmem>>, %arg1: memref<8x9xf32, #tpu.memory_space<vmem>>, %arg2: memref<24xf32, #tpu.memory_space<smem>>, %arg3: memref<32x384xf32, #tpu.memory_space<vmem>>, %arg4: memref<1x384xf32, #tpu.memory_space<vmem>>, %arg5: memref<384x384xf32, #tpu.memory_space<vmem>>, %arg6: memref<1x384xf32, #tpu.memory_space<vmem>>, %arg7: memref<384x128xf32, #tpu.memory_space<vmem>>, %arg8: memref<1x128xf32, #tpu.memory_space<vmem>>, %arg9: memref<8x128xf32, #tpu.memory_space<vmem>>, %arg10: memref<8x32xf32, #tpu.memory_space<vmem>>) attributes {dimension_semantics = [], scalar_prefetch = 0 : i64, scratch_operands = 1 : i64, tpu.core_type = #tpu.core_type<tc>} {
    %c0 = arith.constant 0 : index
    %c0_0 = arith.constant 0 : index
    %0 = vector.load %arg0[%c0, %c0_0] : memref<8x9xf32, #tpu.memory_space<vmem>>, vector<8x9xf32>
    %c0_1 = arith.constant 0 : index
    %c0_2 = arith.constant 0 : index
    %1 = vector.load %arg1[%c0_1, %c0_2] : memref<8x9xf32, #tpu.memory_space<vmem>>, vector<8x9xf32>
    %2 = vector.extract_strided_slice %0 {offsets = [0, 0], sizes = [8, 8], strides = [1, 1]} : vector<8x9xf32> to vector<8x8xf32>
    %3 = vector.extract_strided_slice %1 {offsets = [0, 0], sizes = [8, 8], strides = [1, 1]} : vector<8x9xf32> to vector<8x8xf32>
    %4 = vector.extract_strided_slice %1 {offsets = [0, 0], sizes = [8, 8], strides = [1, 1]} : vector<8x9xf32> to vector<8x8xf32>
    %5 = vector.extract_strided_slice %0 {offsets = [0, 1], sizes = [8, 8], strides = [1, 1]} : vector<8x9xf32> to vector<8x8xf32>
    %6 = vector.extract_strided_slice %0 {offsets = [0, 1], sizes = [8, 8], strides = [1, 1]} : vector<8x9xf32> to vector<8x8xf32>
    %7 = vector.extract_strided_slice %1 {offsets = [0, 1], sizes = [8, 8], strides = [1, 1]} : vector<8x9xf32> to vector<8x8xf32>
    %c0_3 = arith.constant 0 : index
    %8 = memref.load %arg2[%c0_3] : memref<24xf32, #tpu.memory_space<smem>>
    %9 = vector.broadcast %8 : f32 to vector<8x8xf32>
    %10 = arith.mulf %9, %2 : vector<8x8xf32>
    %11 = vector.broadcast %8 : f32 to vector<8x8xf32>
    %12 = arith.mulf %11, %3 : vector<8x8xf32>
    %c1 = arith.constant 1 : index
    %13 = memref.load %arg2[%c1] : memref<24xf32, #tpu.memory_space<smem>>
    %14 = vector.broadcast %13 : f32 to vector<8x8xf32>
    %15 = arith.mulf %14, %4 : vector<8x8xf32>
    %16 = vector.broadcast %13 : f32 to vector<8x8xf32>
    %17 = arith.mulf %16, %5 : vector<8x8xf32>
    %18 = arith.addf %10, %15 : vector<8x8xf32>
    %19 = arith.addf %12, %17 : vector<8x8xf32>
    %c2 = arith.constant 2 : index
    %20 = memref.load %arg2[%c2] : memref<24xf32, #tpu.memory_space<smem>>
    %21 = vector.broadcast %20 : f32 to vector<8x8xf32>
    %22 = arith.mulf %21, %6 : vector<8x8xf32>
    %23 = vector.broadcast %20 : f32 to vector<8x8xf32>
    %24 = arith.mulf %23, %7 : vector<8x8xf32>
    %25 = arith.addf %18, %22 : vector<8x8xf32>
    %26 = arith.addf %19, %24 : vector<8x8xf32>
    %c12 = arith.constant 12 : index
    %27 = memref.load %arg2[%c12] : memref<24xf32, #tpu.memory_space<smem>>
    %28 = arith.maximumf %25, %26 : vector<8x8xf32>
    %29 = vector.broadcast %27 : f32 to vector<8x8xf32>
    %30 = arith.addf %28, %29 : vector<8x8xf32>
    %cst = arith.constant 0.000000e+00 : f32
    %31 = vector.broadcast %cst : f32 to vector<8x8xf32>
    %32 = arith.maximumf %30, %31 : vector<8x8xf32>
    %33 = vector.extract_strided_slice %32 {offsets = [0, 0], sizes = [2, 8], strides = [1, 1]} : vector<8x8xf32> to vector<2x8xf32>
    %cst_4 = arith.constant dense<0.000000e+00> : vector<2xf32>
    %34 = vector.multi_reduction <add>, %33, %cst_4 [1] : vector<2x8xf32> to vector<2xf32>
    %35 = vector.shape_cast %34 : vector<2xf32> to vector<2x1xf32>
    %cst_5 = arith.constant dense<0.000000e+00> : vector<1xf32>
    %36 = vector.multi_reduction <add>, %35, %cst_5 [0] : vector<2x1xf32> to vector<1xf32>
    %37 = vector.shape_cast %36 : vector<1xf32> to vector<1x1xf32>
    %38 = arith.mulf %33, %33 : vector<2x8xf32>
    %cst_6 = arith.constant dense<0.000000e+00> : vector<2xf32>
    %39 = vector.multi_reduction <add>, %38, %cst_6 [1] : vector<2x8xf32> to vector<2xf32>
    %40 = vector.shape_cast %39 : vector<2xf32> to vector<2x1xf32>
    %cst_7 = arith.constant dense<0.000000e+00> : vector<1xf32>
    %41 = vector.multi_reduction <add>, %40, %cst_7 [0] : vector<2x1xf32> to vector<1xf32>
    %42 = vector.shape_cast %41 : vector<1xf32> to vector<1x1xf32>
    %cst_8 = arith.constant 6.250000e-02 : f32
    %43 = vector.broadcast %cst_8 : f32 to vector<1x1xf32>
    %44 = arith.mulf %37, %43 : vector<1x1xf32>
    %cst_9 = arith.constant 6.250000e-02 : f32
    %45 = vector.broadcast %cst_9 : f32 to vector<1x1xf32>
    %46 = arith.mulf %42, %45 : vector<1x1xf32>
    %47 = arith.mulf %44, %44 : vector<1x1xf32>
    %48 = arith.subf %46, %47 : vector<1x1xf32>
    %c16 = arith.constant 16 : index
    %49 = memref.load %arg2[%c16] : memref<24xf32, #tpu.memory_space<smem>>
    %c20 = arith.constant 20 : index
    %50 = memref.load %arg2[%c20] : memref<24xf32, #tpu.memory_space<smem>>
    %cst_10 = arith.constant 9.99999974E-6 : f32
    %51 = vector.broadcast %cst_10 : f32 to vector<1x1xf32>
    %52 = arith.addf %48, %51 : vector<1x1xf32>
    %53 = math.rsqrt %52 : vector<1x1xf32>
    %54 = vector.broadcast %49 : f32 to vector<1x1xf32>
    %55 = arith.mulf %54, %53 : vector<1x1xf32>
    %56 = arith.mulf %44, %55 : vector<1x1xf32>
    %57 = vector.broadcast %50 : f32 to vector<1x1xf32>
    %58 = arith.subf %57, %56 : vector<1x1xf32>
    %59 = vector.broadcast %55 : vector<1x1xf32> to vector<8x8xf32>
    %60 = arith.mulf %32, %59 : vector<8x8xf32>
    %61 = vector.broadcast %58 : vector<1x1xf32> to vector<8x8xf32>
    %62 = arith.addf %60, %61 : vector<8x8xf32>
    %c0_11 = arith.constant 0 : index
    %c0_12 = arith.constant 0 : index
    %63 = vector.load %arg10[%c0_11, %c0_12] : memref<8x32xf32, #tpu.memory_space<vmem>>, vector<8x8xf32>
    tpu.vector_store %arg10[%c0_11, %c0_12], %62 {strides = array<i32>} : memref<8x32xf32, #tpu.memory_space<vmem>>, vector<8x8xf32>,
    %c3 = arith.constant 3 : index
    %64 = memref.load %arg2[%c3] : memref<24xf32, #tpu.memory_space<smem>>
    %65 = vector.broadcast %64 : f32 to vector<8x8xf32>
    %66 = arith.mulf %65, %2 : vector<8x8xf32>
    %67 = vector.broadcast %64 : f32 to vector<8x8xf32>
    %68 = arith.mulf %67, %3 : vector<8x8xf32>
    %c4 = arith.constant 4 : index
    %69 = memref.load %arg2[%c4] : memref<24xf32, #tpu.memory_space<smem>>
    %70 = vector.broadcast %69 : f32 to vector<8x8xf32>
    %71 = arith.mulf %70, %4 : vector<8x8xf32>
    %72 = vector.broadcast %69 : f32 to vector<8x8xf32>
    %73 = arith.mulf %72, %5 : vector<8x8xf32>
    %74 = arith.addf %66, %71 : vector<8x8xf32>
    %75 = arith.addf %68, %73 : vector<8x8xf32>
    %c5 = arith.constant 5 : index
    %76 = memref.load %arg2[%c5] : memref<24xf32, #tpu.memory_space<smem>>
    %77 = vector.broadcast %76 : f32 to vector<8x8xf32>
    %78 = arith.mulf %77, %6 : vector<8x8xf32>
    %79 = vector.broadcast %76 : f32 to vector<8x8xf32>
    %80 = arith.mulf %79, %7 : vector<8x8xf32>
    %81 = arith.addf %74, %78 : vector<8x8xf32>
    %82 = arith.addf %75, %80 : vector<8x8xf32>
    %c13 = arith.constant 13 : index
    %83 = memref.load %arg2[%c13] : memref<24xf32, #tpu.memory_space<smem>>
    %84 = arith.maximumf %81, %82 : vector<8x8xf32>
    %85 = vector.broadcast %83 : f32 to vector<8x8xf32>
    %86 = arith.addf %84, %85 : vector<8x8xf32>
    %cst_13 = arith.constant 0.000000e+00 : f32
    %87 = vector.broadcast %cst_13 : f32 to vector<8x8xf32>
    %88 = arith.maximumf %86, %87 : vector<8x8xf32>
    %89 = vector.extract_strided_slice %88 {offsets = [0, 0], sizes = [2, 8], strides = [1, 1]} : vector<8x8xf32> to vector<2x8xf32>
    %cst_14 = arith.constant dense<0.000000e+00> : vector<2xf32>
    %90 = vector.multi_reduction <add>, %89, %cst_14 [1] : vector<2x8xf32> to vector<2xf32>
    %91 = vector.shape_cast %90 : vector<2xf32> to vector<2x1xf32>
    %cst_15 = arith.constant dense<0.000000e+00> : vector<1xf32>
    %92 = vector.multi_reduction <add>, %91, %cst_15 [0] : vector<2x1xf32> to vector<1xf32>
    %93 = vector.shape_cast %92 : vector<1xf32> to vector<1x1xf32>
    %94 = arith.mulf %89, %89 : vector<2x8xf32>
    %cst_16 = arith.constant dense<0.000000e+00> : vector<2xf32>
    %95 = vector.multi_reduction <add>, %94, %cst_16 [1] : vector<2x8xf32> to vector<2xf32>
    %96 = vector.shape_cast %95 : vector<2xf32> to vector<2x1xf32>
    %cst_17 = arith.constant dense<0.000000e+00> : vector<1xf32>
    %97 = vector.multi_reduction <add>, %96, %cst_17 [0] : vector<2x1xf32> to vector<1xf32>
    %98 = vector.shape_cast %97 : vector<1xf32> to vector<1x1xf32>
    %cst_18 = arith.constant 6.250000e-02 : f32
    %99 = vector.broadcast %cst_18 : f32 to vector<1x1xf32>
    %100 = arith.mulf %93, %99 : vector<1x1xf32>
    %cst_19 = arith.constant 6.250000e-02 : f32
    %101 = vector.broadcast %cst_19 : f32 to vector<1x1xf32>
    %102 = arith.mulf %98, %101 : vector<1x1xf32>
    %103 = arith.mulf %100, %100 : vector<1x1xf32>
    %104 = arith.subf %102, %103 : vector<1x1xf32>
    %c17 = arith.constant 17 : index
    %105 = memref.load %arg2[%c17] : memref<24xf32, #tpu.memory_space<smem>>
    %c21 = arith.constant 21 : index
    %106 = memref.load %arg2[%c21] : memref<24xf32, #tpu.memory_space<smem>>
    %cst_20 = arith.constant 9.99999974E-6 : f32
    %107 = vector.broadcast %cst_20 : f32 to vector<1x1xf32>
    %108 = arith.addf %104, %107 : vector<1x1xf32>
    %109 = math.rsqrt %108 : vector<1x1xf32>
    %110 = vector.broadcast %105 : f32 to vector<1x1xf32>
    %111 = arith.mulf %110, %109 : vector<1x1xf32>
    %112 = arith.mulf %100, %111 : vector<1x1xf32>
    %113 = vector.broadcast %106 : f32 to vector<1x1xf32>
    %114 = arith.subf %113, %112 : vector<1x1xf32>
    %115 = vector.broadcast %111 : vector<1x1xf32> to vector<8x8xf32>
    %116 = arith.mulf %88, %115 : vector<8x8xf32>
    %117 = vector.broadcast %114 : vector<1x1xf32> to vector<8x8xf32>
    %118 = arith.addf %116, %117 : vector<8x8xf32>
    %c0_21 = arith.constant 0 : index
    %c8 = arith.constant 8 : index
    %119 = vector.load %arg10[%c0_21, %c8] : memref<8x32xf32, #tpu.memory_space<vmem>>, vector<8x8xf32>
    tpu.vector_store %arg10[%c0_21, %c8], %118 {strides = array<i32>} : memref<8x32xf32, #tpu.memory_space<vmem>>, vector<8x8xf32>,
    %c6 = arith.constant 6 : index
    %120 = memref.load %arg2[%c6] : memref<24xf32, #tpu.memory_space<smem>>
    %121 = vector.broadcast %120 : f32 to vector<8x8xf32>
    %122 = arith.mulf %121, %2 : vector<8x8xf32>
    %123 = vector.broadcast %120 : f32 to vector<8x8xf32>
    %124 = arith.mulf %123, %3 : vector<8x8xf32>
    %c7 = arith.constant 7 : index
    %125 = memref.load %arg2[%c7] : memref<24xf32, #tpu.memory_space<smem>>
    %126 = vector.broadcast %125 : f32 to vector<8x8xf32>
    %127 = arith.mulf %126, %4 : vector<8x8xf32>
    %128 = vector.broadcast %125 : f32 to vector<8x8xf32>
    %129 = arith.mulf %128, %5 : vector<8x8xf32>
    %130 = arith.addf %122, %127 : vector<8x8xf32>
    %131 = arith.addf %124, %129 : vector<8x8xf32>
    %c8_22 = arith.constant 8 : index
    %132 = memref.load %arg2[%c8_22] : memref<24xf32, #tpu.memory_space<smem>>
    %133 = vector.broadcast %132 : f32 to vector<8x8xf32>
    %134 = arith.mulf %133, %6 : vector<8x8xf32>
    %135 = vector.broadcast %132 : f32 to vector<8x8xf32>
    %136 = arith.mulf %135, %7 : vector<8x8xf32>
    %137 = arith.addf %130, %134 : vector<8x8xf32>
    %138 = arith.addf %131, %136 : vector<8x8xf32>
    %c14 = arith.constant 14 : index
    %139 = memref.load %arg2[%c14] : memref<24xf32, #tpu.memory_space<smem>>
    %140 = arith.maximumf %137, %138 : vector<8x8xf32>
    %141 = vector.broadcast %139 : f32 to vector<8x8xf32>
    %142 = arith.addf %140, %141 : vector<8x8xf32>
    %cst_23 = arith.constant 0.000000e+00 : f32
    %143 = vector.broadcast %cst_23 : f32 to vector<8x8xf32>
    %144 = arith.maximumf %142, %143 : vector<8x8xf32>
    %145 = vector.extract_strided_slice %144 {offsets = [0, 0], sizes = [2, 8], strides = [1, 1]} : vector<8x8xf32> to vector<2x8xf32>
    %cst_24 = arith.constant dense<0.000000e+00> : vector<2xf32>
    %146 = vector.multi_reduction <add>, %145, %cst_24 [1] : vector<2x8xf32> to vector<2xf32>
    %147 = vector.shape_cast %146 : vector<2xf32> to vector<2x1xf32>
    %cst_25 = arith.constant dense<0.000000e+00> : vector<1xf32>
    %148 = vector.multi_reduction <add>, %147, %cst_25 [0] : vector<2x1xf32> to vector<1xf32>
    %149 = vector.shape_cast %148 : vector<1xf32> to vector<1x1xf32>
    %150 = arith.mulf %145, %145 : vector<2x8xf32>
    %cst_26 = arith.constant dense<0.000000e+00> : vector<2xf32>
    %151 = vector.multi_reduction <add>, %150, %cst_26 [1] : vector<2x8xf32> to vector<2xf32>
    %152 = vector.shape_cast %151 : vector<2xf32> to vector<2x1xf32>
    %cst_27 = arith.constant dense<0.000000e+00> : vector<1xf32>
    %153 = vector.multi_reduction <add>, %152, %cst_27 [0] : vector<2x1xf32> to vector<1xf32>
    %154 = vector.shape_cast %153 : vector<1xf32> to vector<1x1xf32>
    %cst_28 = arith.constant 6.250000e-02 : f32
    %155 = vector.broadcast %cst_28 : f32 to vector<1x1xf32>
    %156 = arith.mulf %149, %155 : vector<1x1xf32>
    %cst_29 = arith.constant 6.250000e-02 : f32
    %157 = vector.broadcast %cst_29 : f32 to vector<1x1xf32>
    %158 = arith.mulf %154, %157 : vector<1x1xf32>
    %159 = arith.mulf %156, %156 : vector<1x1xf32>
    %160 = arith.subf %158, %159 : vector<1x1xf32>
    %c18 = arith.constant 18 : index
    %161 = memref.load %arg2[%c18] : memref<24xf32, #tpu.memory_space<smem>>
    %c22 = arith.constant 22 : index
    %162 = memref.load %arg2[%c22] : memref<24xf32, #tpu.memory_space<smem>>
    %cst_30 = arith.constant 9.99999974E-6 : f32
    %163 = vector.broadcast %cst_30 : f32 to vector<1x1xf32>
    %164 = arith.addf %160, %163 : vector<1x1xf32>
    %165 = math.rsqrt %164 : vector<1x1xf32>
    %166 = vector.broadcast %161 : f32 to vector<1x1xf32>
    %167 = arith.mulf %166, %165 : vector<1x1xf32>
    %168 = arith.mulf %156, %167 : vector<1x1xf32>
    %169 = vector.broadcast %162 : f32 to vector<1x1xf32>
    %170 = arith.subf %169, %168 : vector<1x1xf32>
    %171 = vector.broadcast %167 : vector<1x1xf32> to vector<8x8xf32>
    %172 = arith.mulf %144, %171 : vector<8x8xf32>
    %173 = vector.broadcast %170 : vector<1x1xf32> to vector<8x8xf32>
    %174 = arith.addf %172, %173 : vector<8x8xf32>
    %c0_31 = arith.constant 0 : index
    %c16_32 = arith.constant 16 : index
    %175 = vector.load %arg10[%c0_31, %c16_32] : memref<8x32xf32, #tpu.memory_space<vmem>>, vector<8x8xf32>
    tpu.vector_store %arg10[%c0_31, %c16_32], %174 {strides = array<i32>} : memref<8x32xf32, #tpu.memory_space<vmem>>, vector<8x8xf32>,
    %c9 = arith.constant 9 : index
    %176 = memref.load %arg2[%c9] : memref<24xf32, #tpu.memory_space<smem>>
    %177 = vector.broadcast %176 : f32 to vector<8x8xf32>
    %178 = arith.mulf %177, %2 : vector<8x8xf32>
    %179 = vector.broadcast %176 : f32 to vector<8x8xf32>
    %180 = arith.mulf %179, %3 : vector<8x8xf32>
    %c10 = arith.constant 10 : index
    %181 = memref.load %arg2[%c10] : memref<24xf32, #tpu.memory_space<smem>>
    %182 = vector.broadcast %181 : f32 to vector<8x8xf32>
    %183 = arith.mulf %182, %4 : vector<8x8xf32>
    %184 = vector.broadcast %181 : f32 to vector<8x8xf32>
    %185 = arith.mulf %184, %5 : vector<8x8xf32>
    %186 = arith.addf %178, %183 : vector<8x8xf32>
    %187 = arith.addf %180, %185 : vector<8x8xf32>
    %c11 = arith.constant 11 : index
    %188 = memref.load %arg2[%c11] : memref<24xf32, #tpu.memory_space<smem>>
    %189 = vector.broadcast %188 : f32 to vector<8x8xf32>
    %190 = arith.mulf %189, %6 : vector<8x8xf32>
    %191 = vector.broadcast %188 : f32 to vector<8x8xf32>
    %192 = arith.mulf %191, %7 : vector<8x8xf32>
    %193 = arith.addf %186, %190 : vector<8x8xf32>
    %194 = arith.addf %187, %192 : vector<8x8xf32>
    %c15 = arith.constant 15 : index
    %195 = memref.load %arg2[%c15] : memref<24xf32, #tpu.memory_space<smem>>
    %196 = arith.maximumf %193, %194 : vector<8x8xf32>
    %197 = vector.broadcast %195 : f32 to vector<8x8xf32>
    %198 = arith.addf %196, %197 : vector<8x8xf32>
    %cst_33 = arith.constant 0.000000e+00 : f32
    %199 = vector.broadcast %cst_33 : f32 to vector<8x8xf32>
    %200 = arith.maximumf %198, %199 : vector<8x8xf32>
    %201 = vector.extract_strided_slice %200 {offsets = [0, 0], sizes = [2, 8], strides = [1, 1]} : vector<8x8xf32> to vector<2x8xf32>
    %cst_34 = arith.constant dense<0.000000e+00> : vector<2xf32>
    %202 = vector.multi_reduction <add>, %201, %cst_34 [1] : vector<2x8xf32> to vector<2xf32>
    %203 = vector.shape_cast %202 : vector<2xf32> to vector<2x1xf32>
    %cst_35 = arith.constant dense<0.000000e+00> : vector<1xf32>
    %204 = vector.multi_reduction <add>, %203, %cst_35 [0] : vector<2x1xf32> to vector<1xf32>
    %205 = vector.shape_cast %204 : vector<1xf32> to vector<1x1xf32>
    %206 = arith.mulf %201, %201 : vector<2x8xf32>
    %cst_36 = arith.constant dense<0.000000e+00> : vector<2xf32>
    %207 = vector.multi_reduction <add>, %206, %cst_36 [1] : vector<2x8xf32> to vector<2xf32>
    %208 = vector.shape_cast %207 : vector<2xf32> to vector<2x1xf32>
    %cst_37 = arith.constant dense<0.000000e+00> : vector<1xf32>
    %209 = vector.multi_reduction <add>, %208, %cst_37 [0] : vector<2x1xf32> to vector<1xf32>
    %210 = vector.shape_cast %209 : vector<1xf32> to vector<1x1xf32>
    %cst_38 = arith.constant 6.250000e-02 : f32
    %211 = vector.broadcast %cst_38 : f32 to vector<1x1xf32>
    %212 = arith.mulf %205, %211 : vector<1x1xf32>
    %cst_39 = arith.constant 6.250000e-02 : f32
    %213 = vector.broadcast %cst_39 : f32 to vector<1x1xf32>
    %214 = arith.mulf %210, %213 : vector<1x1xf32>
    %215 = arith.mulf %212, %212 : vector<1x1xf32>
    %216 = arith.subf %214, %215 : vector<1x1xf32>
    %c19 = arith.constant 19 : index
    %217 = memref.load %arg2[%c19] : memref<24xf32, #tpu.memory_space<smem>>
    %c23 = arith.constant 23 : index
    %218 = memref.load %arg2[%c23] : memref<24xf32, #tpu.memory_space<smem>>
    %cst_40 = arith.constant 9.99999974E-6 : f32
    %219 = vector.broadcast %cst_40 : f32 to vector<1x1xf32>
    %220 = arith.addf %216, %219 : vector<1x1xf32>
    %221 = math.rsqrt %220 : vector<1x1xf32>
    %222 = vector.broadcast %217 : f32 to vector<1x1xf32>
    %223 = arith.mulf %222, %221 : vector<1x1xf32>
    %224 = arith.mulf %212, %223 : vector<1x1xf32>
    %225 = vector.broadcast %218 : f32 to vector<1x1xf32>
    %226 = arith.subf %225, %224 : vector<1x1xf32>
    %227 = vector.broadcast %223 : vector<1x1xf32> to vector<8x8xf32>
    %228 = arith.mulf %200, %227 : vector<8x8xf32>
    %229 = vector.broadcast %226 : vector<1x1xf32> to vector<8x8xf32>
    %230 = arith.addf %228, %229 : vector<8x8xf32>
    %c0_41 = arith.constant 0 : index
    %c24 = arith.constant 24 : index
    %231 = vector.load %arg10[%c0_41, %c24] : memref<8x32xf32, #tpu.memory_space<vmem>>, vector<8x8xf32>
    tpu.vector_store %arg10[%c0_41, %c24], %230 {strides = array<i32>} : memref<8x32xf32, #tpu.memory_space<vmem>>, vector<8x8xf32>,
    %c0_42 = arith.constant 0 : index
    %c0_43 = arith.constant 0 : index
    %232 = vector.load %arg10[%c0_42, %c0_43] : memref<8x32xf32, #tpu.memory_space<vmem>>, vector<8x32xf32>
    %c0_44 = arith.constant 0 : index
    %c0_45 = arith.constant 0 : index
    %233 = vector.load %arg3[%c0_44, %c0_45] : memref<32x384xf32, #tpu.memory_space<vmem>>, vector<32x384xf32>
    %cst_46 = arith.constant dense<0.000000e+00> : vector<8x384xf32>
    %234 = tpu.matmul %232, %233, %cst_46 {dimension_numbers = #tpu.dot_dimension_numbers<[1], [0], [0], [1], [0, 0, 1, 1], [], []>} : vector<8x32xf32>, vector<32x384xf32>, vector<8x384xf32> -> vector<8x384xf32>
    %c0_47 = arith.constant 0 : index
    %c0_48 = arith.constant 0 : index
    %235 = vector.load %arg4[%c0_47, %c0_48] : memref<1x384xf32, #tpu.memory_space<vmem>>, vector<1x384xf32>
    %236 = vector.broadcast %235 : vector<1x384xf32> to vector<8x384xf32>
    %237 = arith.addf %234, %236 : vector<8x384xf32>
    %cst_49 = arith.constant 0.000000e+00 : f32
    %238 = vector.broadcast %cst_49 : f32 to vector<8x384xf32>
    %239 = arith.maximumf %237, %238 : vector<8x384xf32>
    %c0_50 = arith.constant 0 : index
    %c0_51 = arith.constant 0 : index
    %240 = vector.load %arg5[%c0_50, %c0_51] : memref<384x384xf32, #tpu.memory_space<vmem>>, vector<384x384xf32>
    %cst_52 = arith.constant dense<0.000000e+00> : vector<8x384xf32>
    %241 = tpu.matmul %239, %240, %cst_52 {dimension_numbers = #tpu.dot_dimension_numbers<[1], [0], [0], [1], [0, 0, 1, 1], [], []>} : vector<8x384xf32>, vector<384x384xf32>, vector<8x384xf32> -> vector<8x384xf32>
    %c0_53 = arith.constant 0 : index
    %c0_54 = arith.constant 0 : index
    %242 = vector.load %arg6[%c0_53, %c0_54] : memref<1x384xf32, #tpu.memory_space<vmem>>, vector<1x384xf32>
    %243 = vector.broadcast %242 : vector<1x384xf32> to vector<8x384xf32>
    %244 = arith.addf %241, %243 : vector<8x384xf32>
    %cst_55 = arith.constant 0.000000e+00 : f32
    %245 = vector.broadcast %cst_55 : f32 to vector<8x384xf32>
    %246 = arith.maximumf %244, %245 : vector<8x384xf32>
    %c0_56 = arith.constant 0 : index
    %c0_57 = arith.constant 0 : index
    %247 = vector.load %arg7[%c0_56, %c0_57] : memref<384x128xf32, #tpu.memory_space<vmem>>, vector<384x128xf32>
    %cst_58 = arith.constant dense<0.000000e+00> : vector<8x128xf32>
    %248 = tpu.matmul %246, %247, %cst_58 {dimension_numbers = #tpu.dot_dimension_numbers<[1], [0], [0], [1], [0, 0, 1, 1], [], []>} : vector<8x384xf32>, vector<384x128xf32>, vector<8x128xf32> -> vector<8x128xf32>
    %c0_59 = arith.constant 0 : index
    %c0_60 = arith.constant 0 : index
    %249 = vector.load %arg8[%c0_59, %c0_60] : memref<1x128xf32, #tpu.memory_space<vmem>>, vector<1x128xf32>
    %250 = vector.broadcast %249 : vector<1x128xf32> to vector<8x128xf32>
    %251 = arith.addf %248, %250 : vector<8x128xf32>
    %c0_61 = arith.constant 0 : index
    %c0_62 = arith.constant 0 : index
    %252 = vector.load %arg9[%c0_61, %c0_62] : memref<8x128xf32, #tpu.memory_space<vmem>>, vector<8x128xf32>
    tpu.vector_store %arg9[%c0_61, %c0_62], %251 {strides = array<i32>} : memref<8x128xf32, #tpu.memory_space<vmem>>, vector<8x128xf32>,
    return
  }
}

</mosaic_0001>

<llo_original>
// kernel: tpu_custom_call.1
$region0: #{tpu_custom_call.1}
  #allocation0 [shape = 'u32[]', space=smem, size = 0x4, offset = 0x4, fixed_abs, tag = 'smem constant byte address 0x4 - core index']
  #allocation1 [shape = 'u32[144,128]{1,0:T(1,128)}', space=vmem, size = 0x12000, scoped, tag = 'internal scratch']
  #allocation2 [shape = 'f32[8,32]{1,0:T(8,128)}', space=vmem, size = 0x1000, scoped, tag = 'scratch operand']
  %s0 = inlined_call_operand.hbm [shape: f32[8,9], index: 0, kind: input, shape index: {}]
  %s1 = inlined_call_operand.hbm [shape: f32[8,9], index: 1, kind: input, shape index: {}]
  %s2 = inlined_call_operand.vmem [shape: f32[24], index: 2, kind: input, shape index: {}]
  %s3 = inlined_call_operand.hbm [shape: f32[32,384], index: 3, kind: input, shape index: {}]
  %s4 = inlined_call_operand.vmem [shape: f32[1,384], index: 4, kind: input, shape index: {}]
  %s5 = inlined_call_operand.hbm [shape: f32[384,384], index: 5, kind: input, shape index: {}]
  %s6 = inlined_call_operand.vmem [shape: f32[1,384], index: 6, kind: input, shape index: {}]
  %s7 = inlined_call_operand.hbm [shape: f32[384,128], index: 7, kind: input, shape index: {}]
  %s8 = inlined_call_operand.vmem [shape: f32[1,128], index: 8, kind: input, shape index: {}]
  %s9 = inlined_call_operand.hbm [shape: f32[8,128], index: 9, kind: output, shape index: {}]
  %s10 = sld [smem:[#allocation0]]
  $region70: #{tpu_custom_call.1} parent=0
    _
  %s12 = ssub.s32 1, %s10
  %s13 = scalar_select 0, %s12, %s10
  $region1: #{tpu_custom_call.1} parent=0
    #allocation3 [shape = 'u8[4096]{0}', space=vmem, size = 0x1000, scoped, tag = 'input window, operand 0, single buffered']
    #allocation4 [shape = 's32[1]{0}', space=sflag, size = 0x4, scoped, tag = 'scoped memory for tpu_custom_call.1']
    #allocation5 [shape = 's32[1]{0}', space=sflag, size = 0x4, scoped, tag = 'scoped memory for tpu_custom_call.1']
    #allocation6 [shape = 's32[1]{0}', space=sflag, size = 0x4, scoped, tag = 'scoped memory for tpu_custom_call.1']
    #allocation7 [shape = 'u8[4096]{0}', space=vmem, size = 0x1000, scoped, tag = 'input window, operand 1, single buffered']
    #allocation8 [shape = 's32[1]{0}', space=sflag, size = 0x4, scoped, tag = 'scoped memory for tpu_custom_call.1']
    #allocation9 [shape = 'u8[512]{0}', space=smem, size = 0x200, scoped, tag = 'input window, operand 2, single buffered']
    #allocation10 [shape = 'u8[49152]{0}', space=vmem, size = 0xc000, scoped, tag = 'input window, operand 3, single buffered']
    #allocation11 [shape = 'u8[589824]{0}', space=vmem, size = 0x90000, scoped, tag = 'input window, operand 5, single buffered']
    #allocation12 [shape = 's32[1]{0}', space=sflag, size = 0x4, scoped, tag = 'scoped memory for tpu_custom_call.1']
    #allocation13 [shape = 'u8[196608]{0}', space=vmem, size = 0x30000, scoped, tag = 'input window, operand 7, single buffered']
    #allocation14 [shape = 'u8[4096]{0}', space=vmem, size = 0x1000, scoped, tag = 'output window, operand 0, single buffered']
    %14 = vsyncpa [#allocation4], 0
    %15 = vsyncpa [#allocation8], 0
    %16 = vsyncpa [#allocation6], 0
    %17 = vsyncpa [#allocation12], 0
    %18 = vsyncpa [#allocation5], 0
    // Predicated region
    $region2: #{tpu_custom_call.1} parent=1 // pred_check
      _
    $region3: #{tpu_custom_call.1} parent=1 // pred_check_branch
      %20 = sbr.rel (0) target = $region5
    $region4: #{tpu_custom_call.1} parent=1 // pred_region
      %s22 = ssub.s32 128, 128
      %23 = vsyncadd [#allocation4], %s22
      %s25 = sshll.u32 [#allocation3], 4
      %s26 = int_to_ptr.vmem [resolvable:$true] %s25
      %28 = dma.hbm_to_vmem [thread:$0]  %s0, 128, %s26, [#allocation4]
    $region5: #{tpu_custom_call.1} parent=1 // pred_fallthru
      _
    // Predicated region
    $region6: #{tpu_custom_call.1} parent=1 // pred_check
      _
    $region7: #{tpu_custom_call.1} parent=1 // pred_check_branch
      %30 = sbr.rel (0) target = $region9
    $region8: #{tpu_custom_call.1} parent=1 // pred_region
      %s32 = ssub.s32 128, 128
      %33 = vsyncadd [#allocation8], %s32
      %s35 = sshll.u32 [#allocation7], 4
      %s36 = int_to_ptr.vmem [resolvable:$true] %s35
      %38 = dma.hbm_to_vmem [thread:$0]  %s1, 128, %s36, [#allocation8]
    $region9: #{tpu_custom_call.1} parent=1 // pred_fallthru
      _
    // Predicated region
    $region10: #{tpu_custom_call.1} parent=1 // pred_check
      _
    $region11: #{tpu_custom_call.1} parent=1 // pred_check_branch
      %40 = sbr.rel (0) target = $region13
    $region12: #{tpu_custom_call.1} parent=1 // pred_region
      %s42 = ssub.s32 16, 16
      %43 = vsyncadd [#allocation6], %s42
      %s45 = sshll.u32 %s2, 4
      %s46 = int_to_ptr.vmem [resolvable:$true] %s45
      %48 = dma.vmem_to_smem %s46, 16, [#allocation9], [#allocation6]
    $region13: #{tpu_custom_call.1} parent=1 // pred_fallthru
      _
    // Predicated region
    $region14: #{tpu_custom_call.1} parent=1 // pred_check
      _
    $region15: #{tpu_custom_call.1} parent=1 // pred_check_branch
      %50 = sbr.rel (0) target = $region17
    $region16: #{tpu_custom_call.1} parent=1 // pred_region
      %s52 = ssub.s32 1536, 1536
      %53 = vsyncadd [#allocation8], %s52
      %s54 = sshll.u32 [#allocation10], 4
      %s55 = int_to_ptr.vmem [resolvable:$true] %s54
      %60 = dma.hbm_to_vmem [thread:$0]  %s3, 1536, %s55, [#allocation8], 384, 384, 24
    $region17: #{tpu_custom_call.1} parent=1 // pred_fallthru
      _
    // Predicated region
    $region18: #{tpu_custom_call.1} parent=1 // pred_check
      _
    $region19: #{tpu_custom_call.1} parent=1 // pred_check_branch
      %62 = sbr.rel (0) target = $region21
    $region20: #{tpu_custom_call.1} parent=1 // pred_region
      _
    $region21: #{tpu_custom_call.1} parent=1 // pred_fallthru
      _
    // Predicated region
    $region22: #{tpu_custom_call.1} parent=1 // pred_check
      _
    $region23: #{tpu_custom_call.1} parent=1 // pred_check_branch
      %64 = sbr.rel (0) target = $region25
    $region24: #{tpu_custom_call.1} parent=1 // pred_region
      %s66 = ssub.s32 18432, 18432
      %67 = vsyncadd [#allocation12], %s66
      %s68 = sshll.u32 [#allocation11], 4
      %s69 = int_to_ptr.vmem [resolvable:$true] %s68
      %74 = dma.hbm_to_vmem [thread:$0]  %s5, 18432, %s69, [#allocation12], 384, 384, 24
    $region25: #{tpu_custom_call.1} parent=1 // pred_fallthru
      _
    // Predicated region
    $region26: #{tpu_custom_call.1} parent=1 // pred_check
      _
    $region27: #{tpu_custom_call.1} parent=1 // pred_check_branch
      %76 = sbr.rel (0) target = $region29
    $region28: #{tpu_custom_call.1} parent=1 // pred_region
      _
    $region29: #{tpu_custom_call.1} parent=1 // pred_fallthru
      _
    // Predicated region
    $region30: #{tpu_custom_call.1} parent=1 // pred_check
      _
    $region31: #{tpu_custom_call.1} parent=1 // pred_check_branch
      %78 = sbr.rel (0) target = $region33
    $region32: #{tpu_custom_call.1} parent=1 // pred_region
      %s80 = ssub.s32 6144, 6144
      %81 = vsyncadd [#allocation12], %s80
      %s82 = sshll.u32 [#allocation13], 4
      %s83 = int_to_ptr.vmem [resolvable:$true] %s82
      %88 = dma.hbm_to_vmem [thread:$0]  %s7, 6144, %s83, [#allocation12], 128, 128, 8
    $region33: #{tpu_custom_call.1} parent=1 // pred_fallthru
      _
    // Predicated region
    $region34: #{tpu_custom_call.1} parent=1 // pred_check
      _
    $region35: #{tpu_custom_call.1} parent=1 // pred_check_branch
      %90 = sbr.rel (0) target = $region37
    $region36: #{tpu_custom_call.1} parent=1 // pred_region
      _
    $region37: #{tpu_custom_call.1} parent=1 // pred_fallthru
      _
    // Predicated region
    $region38: #{tpu_custom_call.1} parent=1 // pred_check
      _
    $region39: #{tpu_custom_call.1} parent=1 // pred_check_branch
      %92 = sbr.rel (0) target = $region41
    $region40: #{tpu_custom_call.1} parent=1 // pred_region
      %93 = dma.done [#allocation4], 128
    $region41: #{tpu_custom_call.1} parent=1 // pred_fallthru
      _
    // Predicated region
    $region42: #{tpu_custom_call.1} parent=1 // pred_check
      _
    $region43: #{tpu_custom_call.1} parent=1 // pred_check_branch
      %95 = sbr.rel (0) target = $region45
    $region44: #{tpu_custom_call.1} parent=1 // pred_region
      %96 = dma.done [#allocation8], 128
    $region45: #{tpu_custom_call.1} parent=1 // pred_fallthru
      _
    // Predicated region
    $region46: #{tpu_custom_call.1} parent=1 // pred_check
      _
    $region47: #{tpu_custom_call.1} parent=1 // pred_check_branch
      %98 = sbr.rel (0) target = $region49
    $region48: #{tpu_custom_call.1} parent=1 // pred_region
      %99 = dma.done [#allocation6], 16
    $region49: #{tpu_custom_call.1} parent=1 // pred_fallthru
      _
    // Predicated region
    $region50: #{tpu_custom_call.1} parent=1 // pred_check
      _
    $region51: #{tpu_custom_call.1} parent=1 // pred_check_branch
      %101 = sbr.rel (0) target = $region53
    $region52: #{tpu_custom_call.1} parent=1 // pred_region
      %102 = dma.done [#allocation8], 1536
    $region53: #{tpu_custom_call.1} parent=1 // pred_fallthru
      _
    // Predicated region
    $region54: #{tpu_custom_call.1} parent=1 // pred_check
      _
    $region55: #{tpu_custom_call.1} parent=1 // pred_check_branch
      %104 = sbr.rel (0) target = $region57
    $region56: #{tpu_custom_call.1} parent=1 // pred_region
      %105 = dma.done [#allocation12], 18432
    $region57: #{tpu_custom_call.1} parent=1 // pred_fallthru
      _
    // Predicated region
    $region58: #{tpu_custom_call.1} parent=1 // pred_check
      _
    $region59: #{tpu_custom_call.1} parent=1 // pred_check_branch
      %107 = sbr.rel (0) target = $region61
    $region60: #{tpu_custom_call.1} parent=1 // pred_region
      %108 = dma.done [#allocation12], 6144
    $region61: #{tpu_custom_call.1} parent=1 // pred_fallthru
      _
    %109 = sfence
    %v110 = vld [vmem:[#allocation3] sm:$0xff]
    %v111 = vld [vmem:[#allocation7] sm:$0xff]
    %s112 = sld [smem:[#allocation9]]
    %v113 = vstv %s112
    %v114 = vmul.f32 %v113, %v110
    %v115 = vmul.f32 %v113, %v111
    %s116 = sld [smem:[#allocation9 + $0x1]]
    %v117 = vstv %s116
    %v118 = vmul.f32 %v117, %v111
    %v119 = vmul.f32 %v117, %v110
    %v120 = vadd.f32 %v114, %v118
    %122 = vrot.lane.b32.xlu0 %v119, 127
    %v123 = vpop.permute.xlu0 %122
    %v125 = vadd.f32 %v115, %v123
    %s126 = sld [smem:[#allocation9 + $0x2]]
    %v127 = vstv %s126
    %v128 = vmul.f32 %v127, %v110
    %v129 = vmul.f32 %v127, %v111
    %131 = vrot.lane.b32.xlu0 %v128, 127
    %v132 = vpop.permute.xlu0 %131
    %v134 = vadd.f32 %v120, %v132
    %136 = vrot.lane.b32.xlu0 %v129, 127
    %v137 = vpop.permute.xlu0 %136
    %v139 = vadd.f32 %v125, %v137
    %s140 = sld [smem:[#allocation9 + $0xc]]
    %v141 = vmax.f32 %v134, %v139
    %v142 = vstv %s140
    %v143 = vadd.f32 %v141, %v142
    %v144 = vmax.f32 %v143, 0.0
    %vm145 = vcmask 58368
    %v146 = vsel %vm145, %v144, 0.0
    %147 = vadd.xlane.f32.xlu0 %v146
    %v148 = vpop.xlane.xlu0 %147
    %vm149 = vcmask 1041408
    %v150 = vsel %vm149, %v148, 0.0
    %v151 = vrot.slane %v150, 4
    %v152 = vadd.f32 %v150, %v151
    %v153 = vrot.slane %v152, 2
    %v154 = vadd.f32 %v152, %v153
    %v155 = vrot.slane %v154, 1
    %v156 = vadd.f32 %v154, %v155
    %v157 = vmul.f32 %v144, %v144
    %v158 = vsel %vm145, %v157, 0.0
    %159 = vadd.xlane.f32.xlu0 %v158
    %v160 = vpop.xlane.xlu0 %159
    %v161 = vsel %vm149, %v160, 0.0
    %v162 = vrot.slane %v161, 4
    %v163 = vadd.f32 %v161, %v162
    %v164 = vrot.slane %v163, 2
    %v165 = vadd.f32 %v163, %v164
    %v166 = vrot.slane %v165, 1
    %v167 = vadd.f32 %v165, %v166
    %v168 = vmul.f32 %v156, 0.0625
    %v169 = vmul.f32 %v167, 0.0625
    %v170 = vmul.f32 %v168, %v168
    %v171 = vsub.f32 %v169, %v170
    %s172 = sld [smem:[#allocation9 + $0x10]]
    %s173 = sld [smem:[#allocation9 + $0x14]]
    %v174 = vadd.f32 %v171, 1e-05
    %v175 = vrsqrt.pop %v174
    %v176 = vstv %s172
    %v177 = vmul.f32 %v176, %v175
    %v178 = vmul.f32 %v168, %v177
    %v179 = vstv %s173
    %v180 = vsub.f32 %v179, %v178
    %v181 = vmul.f32 %v144, %v177
    %v182 = vadd.f32 %v181, %v180
    %vm183 = vcmask 64512
    %184 = vst.msk [vmem:[#allocation2] sm:$0xff] %vm183, %v182
    %s185 = sld [smem:[#allocation9 + $0x3]]
    %v186 = vstv %s185
    %v187 = vmul.f32 %v186, %v110
    %v188 = vmul.f32 %v186, %v111
    %s189 = sld [smem:[#allocation9 + $0x4]]
    %v190 = vstv %s189
    %v191 = vmul.f32 %v190, %v111
    %v192 = vmul.f32 %v190, %v110
    %v193 = vadd.f32 %v187, %v191
    %195 = vrot.lane.b32.xlu0 %v192, 127
    %v196 = vpop.permute.xlu0 %195
    %v198 = vadd.f32 %v188, %v196
    %s199 = sld [smem:[#allocation9 + $0x5]]
    %v200 = vstv %s199
    %v201 = vmul.f32 %v200, %v110
    %v202 = vmul.f32 %v200, %v111
    %204 = vrot.lane.b32.xlu0 %v201, 127
    %v205 = vpop.permute.xlu0 %204
    %v207 = vadd.f32 %v193, %v205
    %209 = vrot.lane.b32.xlu0 %v202, 127
    %v210 = vpop.permute.xlu0 %209
    %v212 = vadd.f32 %v198, %v210
    %s213 = sld [smem:[#allocation9 + $0xd]]
    %v214 = vmax.f32 %v207, %v212
    %v215 = vstv %s213
    %v216 = vadd.f32 %v214, %v215
    %v217 = vmax.f32 %v216, 0.0
    %v218 = vsel %vm145, %v217, 0.0
    %219 = vadd.xlane.f32.xlu0 %v218
    %v220 = vpop.xlane.xlu0 %219
    %v221 = vsel %vm149, %v220, 0.0
    %v222 = vrot.slane %v221, 4
    %v223 = vadd.f32 %v221, %v222
    %v224 = vrot.slane %v223, 2
    %v225 = vadd.f32 %v223, %v224
    %v226 = vrot.slane %v225, 1
    %v227 = vadd.f32 %v225, %v226
    %v228 = vmul.f32 %v217, %v217
    %v229 = vsel %vm145, %v228, 0.0
    %230 = vadd.xlane.f32.xlu0 %v229
    %v231 = vpop.xlane.xlu0 %230
    %v232 = vsel %vm149, %v231, 0.0
    %v233 = vrot.slane %v232, 4
    %v234 = vadd.f32 %v232, %v233
    %v235 = vrot.slane %v234, 2
    %v236 = vadd.f32 %v234, %v235
    %v237 = vrot.slane %v236, 1
    %v238 = vadd.f32 %v236, %v237
    %v239 = vmul.f32 %v227, 0.0625
    %v240 = vmul.f32 %v238, 0.0625
    %v241 = vmul.f32 %v239, %v239
    %v242 = vsub.f32 %v240, %v241
    %s243 = sld [smem:[#allocation9 + $0x11]]
    %s244 = sld [smem:[#allocation9 + $0x15]]
    %v245 = vadd.f32 %v242, 1e-05
    %v246 = vrsqrt.pop %v245
    %v247 = vstv %s243
    %v248 = vmul.f32 %v247, %v246
    %v249 = vmul.f32 %v239, %v248
    %v250 = vstv %s244
    %v251 = vsub.f32 %v250, %v249
    %v252 = vmul.f32 %v217, %v248
    %v253 = vadd.f32 %v252, %v251
    %255 = vrot.lane.b32.xlu0 %v253, 8
    %v256 = vpop.permute.xlu0 %255
    %vm258 = vcmask 130112
    %259 = vst.msk [vmem:[#allocation2] sm:$0xff] %vm258, %v256
    %s260 = sld [smem:[#allocation9 + $0x6]]
    %v261 = vstv %s260
    %v262 = vmul.f32 %v261, %v110
    %v263 = vmul.f32 %v261, %v111
    %s264 = sld [smem:[#allocation9 + $0x7]]
    %v265 = vstv %s264
    %v266 = vmul.f32 %v265, %v111
    %v267 = vmul.f32 %v265, %v110
    %v268 = vadd.f32 %v262, %v266
    %270 = vrot.lane.b32.xlu0 %v267, 127
    %v271 = vpop.permute.xlu0 %270
    %v273 = vadd.f32 %v263, %v271
    %s274 = sld [smem:[#allocation9 + $0x8]]
    %v275 = vstv %s274
    %v276 = vmul.f32 %v275, %v110
    %v277 = vmul.f32 %v275, %v111
    %279 = vrot.lane.b32.xlu0 %v276, 127
    %v280 = vpop.permute.xlu0 %279
    %v282 = vadd.f32 %v268, %v280
    %284 = vrot.lane.b32.xlu0 %v277, 127
    %v285 = vpop.permute.xlu0 %284
    %v287 = vadd.f32 %v273, %v285
    %s288 = sld [smem:[#allocation9 + $0xe]]
    %v289 = vmax.f32 %v282, %v287
    %v290 = vstv %s288
    %v291 = vadd.f32 %v289, %v290
    %v292 = vmax.f32 %v291, 0.0
    %v293 = vsel %vm145, %v292, 0.0
    %294 = vadd.xlane.f32.xlu0 %v293
    %v295 = vpop.xlane.xlu0 %294
    %v296 = vsel %vm149, %v295, 0.0
    %v297 = vrot.slane %v296, 4
    %v298 = vadd.f32 %v296, %v297
    %v299 = vrot.slane %v298, 2
    %v300 = vadd.f32 %v298, %v299
    %v301 = vrot.slane %v300, 1
    %v302 = vadd.f32 %v300, %v301
    %v303 = vmul.f32 %v292, %v292
    %v304 = vsel %vm145, %v303, 0.0
    %305 = vadd.xlane.f32.xlu0 %v304
    %v306 = vpop.xlane.xlu0 %305
    %v307 = vsel %vm149, %v306, 0.0
    %v308 = vrot.slane %v307, 4
    %v309 = vadd.f32 %v307, %v308
    %v310 = vrot.slane %v309, 2
    %v311 = vadd.f32 %v309, %v310
    %v312 = vrot.slane %v311, 1
    %v313 = vadd.f32 %v311, %v312
    %v314 = vmul.f32 %v302, 0.0625
    %v315 = vmul.f32 %v313, 0.0625
    %v316 = vmul.f32 %v314, %v314
    %v317 = vsub.f32 %v315, %v316
    %s318 = sld [smem:[#allocation9 + $0x12]]
    %s319 = sld [smem:[#allocation9 + $0x16]]
    %v320 = vadd.f32 %v317, 1e-05
    %v321 = vrsqrt.pop %v320
    %v322 = vstv %s318
    %v323 = vmul.f32 %v322, %v321
    %v324 = vmul.f32 %v314, %v323
    %v325 = vstv %s319
    %v326 = vsub.f32 %v325, %v324
    %v327 = vmul.f32 %v292, %v323
    %v328 = vadd.f32 %v327, %v326
    %330 = vrot.lane.b32.xlu0 %v328, 16
    %v331 = vpop.permute.xlu0 %330
    %vm333 = vcmask 195712
    %334 = vst.msk [vmem:[#allocation2] sm:$0xff] %vm333, %v331
    %s335 = sld [smem:[#allocation9 + $0x9]]
    %v336 = vstv %s335
    %v337 = vmul.f32 %v336, %v110
    %v338 = vmul.f32 %v336, %v111
    %s339 = sld [smem:[#allocation9 + $0xa]]
    %v340 = vstv %s339
    %v341 = vmul.f32 %v340, %v111
    %v342 = vmul.f32 %v340, %v110
    %v343 = vadd.f32 %v337, %v341
    %345 = vrot.lane.b32.xlu0 %v342, 127
    %v346 = vpop.permute.xlu0 %345
    %v348 = vadd.f32 %v338, %v346
    %s349 = sld [smem:[#allocation9 + $0xb]]
    %v350 = vstv %s349
    %v351 = vmul.f32 %v350, %v110
    %v352 = vmul.f32 %v350, %v111
    %354 = vrot.lane.b32.xlu0 %v351, 127
    %v355 = vpop.permute.xlu0 %354
    %v357 = vadd.f32 %v343, %v355
    %359 = vrot.lane.b32.xlu0 %v352, 127
    %v360 = vpop.permute.xlu0 %359
    %v362 = vadd.f32 %v348, %v360
    %s363 = sld [smem:[#allocation9 + $0xf]]
    %v364 = vmax.f32 %v357, %v362
    %v365 = vstv %s363
    %v366 = vadd.f32 %v364, %v365
    %v367 = vmax.f32 %v366, 0.0
    %v368 = vsel %vm145, %v367, 0.0
    %369 = vadd.xlane.f32.xlu0 %v368
    %v370 = vpop.xlane.xlu0 %369
    %v371 = vsel %vm149, %v370, 0.0
    %v372 = vrot.slane %v371, 4
    %v373 = vadd.f32 %v371, %v372
    %v374 = vrot.slane %v373, 2
    %v375 = vadd.f32 %v373, %v374
    %v376 = vrot.slane %v375, 1
    %v377 = vadd.f32 %v375, %v376
    %v378 = vmul.f32 %v367, %v367
    %v379 = vsel %vm145, %v378, 0.0
    %380 = vadd.xlane.f32.xlu0 %v379
    %v381 = vpop.xlane.xlu0 %380
    %v382 = vsel %vm149, %v381, 0.0
    %v383 = vrot.slane %v382, 4
    %v384 = vadd.f32 %v382, %v383
    %v385 = vrot.slane %v384, 2
    %v386 = vadd.f32 %v384, %v385
    %v387 = vrot.slane %v386, 1
    %v388 = vadd.f32 %v386, %v387
    %v389 = vmul.f32 %v377, 0.0625
    %v390 = vmul.f32 %v388, 0.0625
    %v391 = vmul.f32 %v389, %v389
    %v392 = vsub.f32 %v390, %v391
    %s393 = sld [smem:[#allocation9 + $0x13]]
    %s394 = sld [smem:[#allocation9 + $0x17]]
    %v395 = vadd.f32 %v392, 1e-05
    %v396 = vrsqrt.pop %v395
    %v397 = vstv %s393
    %v398 = vmul.f32 %v397, %v396
    %v399 = vmul.f32 %v389, %v398
    %v400 = vstv %s394
    %v401 = vsub.f32 %v400, %v399
    %v402 = vmul.f32 %v367, %v398
    %v403 = vadd.f32 %v402, %v401
    %405 = vrot.lane.b32.xlu0 %v403, 24
    %v406 = vpop.permute.xlu0 %405
    %vm408 = vcmask 261312
    %409 = vst.msk [vmem:[#allocation2] sm:$0xff] %vm408, %v406
    %v410 = vld [vmem:[#allocation2] sm:$0xff]
    %v411 = vld [vmem:[#allocation10] sm:$0xff]
    %v412 = vld [vmem:[#allocation10 + $0x8] sm:$0xff]
    %v413 = vld [vmem:[#allocation10 + $0x10] sm:$0xff]
    %v414 = vld [vmem:[#allocation10 + $0x18] sm:$0xff]
    %v415 = vld [vmem:[#allocation10 + $0x20] sm:$0xff]
    %v416 = vld [vmem:[#allocation10 + $0x28] sm:$0xff]
    %v417 = vld [vmem:[#allocation10 + $0x30] sm:$0xff]
    %v418 = vld [vmem:[#allocation10 + $0x38] sm:$0xff]
    %v419 = vld [vmem:[#allocation10 + $0x40] sm:$0xff]
    %v420 = vld [vmem:[#allocation10 + $0x48] sm:$0xff]
    %v421 = vld [vmem:[#allocation10 + $0x50] sm:$0xff]
    %v422 = vld [vmem:[#allocation10 + $0x58] sm:$0xff]
    %v423 = vld [vmem:[%s4] sm:$0x7]
    %v425 = vlaneseq
    %v426 = vshrl.u32 %v425, 7
    %v427 = vsub.s32 0, %v426
    %v428 = vrot.slane %v423, %v427
    %v429 = vlaneseq
    %v430 = vshrl.u32 %v429, 7
    %v431 = vsub.s32 1, %v430
    %v432 = vrot.slane %v423, %v431
    %v433 = vlaneseq
    %v434 = vshrl.u32 %v433, 7
    %v435 = vsub.s32 2, %v434
    %v436 = vrot.slane %v423, %v435
    %vm440 = vcmask 261120
    %v442 = vsel %vm440, %v410, 0
    %444 = vmatprep.subr.mxu0 0.0
    %445 = vmatpush1.msra.mxu0 0.0
    %446 = vmatprep.subr.mxu0 0.0
    %447 = vmatpush1.msra.mxu0 0.0
    %448 = vmatprep.subr.mxu0 0.0
    %449 = vmatpush1.msra.mxu0 0.0
    %450 = vmatprep.subr.mxu0 0.0
    %451 = vmatpush1.msra.mxu0 0.0
    %452 = vmatprep.subr.mxu0 0.0
    %453 = vmatpush1.msra.mxu0 0.0
    %454 = vmatprep.subr.mxu0 0.0
    %455 = vmatpush1.msra.mxu0 0.0
    %456 = vmatprep.subr.mxu0 0.0
    %457 = vmatpush1.msra.mxu0 0.0
    %458 = vmatprep.subr.mxu0 0.0
    %459 = vmatpush1.msra.mxu0 0.0
    %460 = vmatprep.subr.mxu0 0.0
    %461 = vmatpush1.msra.mxu0 0.0
    %462 = vmatprep.subr.mxu0 0.0
    %463 = vmatpush1.msra.mxu0 0.0
    %464 = vmatprep.subr.mxu0 0.0
    %465 = vmatpush1.msra.mxu0 0.0
    %466 = vmatprep.subr.mxu0 0.0
    %467 = vmatpush1.msra.mxu0 0.0
    %468 = vmatprep.subr.mxu0 %v421
    %469 = vmatpush1.msra.mxu0 %v420
    %470 = vmatprep.subr.mxu0 %v418
    %471 = vmatpush1.msra.mxu0 %v417
    %472 = vmatprep.subr.mxu0 %v415
    %473 = vmatpush1.msra.mxu0 %v414
    %474 = vmatprep.subr.mxu0 %v412
    %475 = vmatpush1.msra.mxu0 %v411
    %476 = vmatprep.subr.mxu0 0.0
    %477 = vmatpush2.msra.mxu0 0.0
    %478 = vmatprep.subr.mxu0 0.0
    %479 = vmatpush2.msra.mxu0 0.0
    %480 = vmatprep.subr.mxu0 0.0
    %481 = vmatpush2.msra.mxu0 0.0
    %482 = vmatprep.subr.mxu0 0.0
    %483 = vmatpush2.msra.mxu0 0.0
    %484 = vmatprep.subr.mxu0 0.0
    %485 = vmatpush2.msra.mxu0 0.0
    %486 = vmatprep.subr.mxu0 0.0
    %487 = vmatpush2.msra.mxu0 0.0
    %488 = vmatprep.subr.mxu0 0.0
    %489 = vmatpush2.msra.mxu0 0.0
    %490 = vmatprep.subr.mxu0 0.0
    %491 = vmatpush2.msra.mxu0 0.0
    %492 = vmatprep.subr.mxu0 0.0
    %493 = vmatpush2.msra.mxu0 0.0
    %494 = vmatprep.subr.mxu0 0.0
    %495 = vmatpush2.msra.mxu0 0.0
    %496 = vmatprep.subr.mxu0 0.0
    %497 = vmatpush2.msra.mxu0 0.0
    %498 = vmatprep.subr.mxu0 0.0
    %499 = vmatpush2.msra.mxu0 0.0
    %500 = vmatprep.subr.mxu0 0.0
    %501 = vmatpush2.msra.mxu0 0.0
    %502 = vmatprep.subr.mxu0 0.0
    %503 = vmatpush2.msra.mxu0 0.0
    %504 = vmatprep.subr.mxu0 0.0
    %505 = vmatpush2.msra.mxu0 0.0
    %506 = vmatprep.subr.mxu0 0.0
    %507 = vmatpush2.msra.mxu0 0.0
    %508 = vmatprep.mubr.f32.mxu0 0.0
    %509 = vmatmul.mubr.f32.gmra.mxu0 %v442
    %v510 = vpop.f32.mrf.mxu0
    %v511 = vadd.f32 %v428, %v510
    %v512 = vpop.f32.mrf.mxu0
    %v513 = vadd.f32 %v432, %v512
    %514 = vdwg.mxu0
    %515 = vmatprep.subr.mxu0 0.0
    %516 = vmatpush1.msra.mxu0 0.0
    %517 = vmatprep.subr.mxu0 0.0
    %518 = vmatpush1.msra.mxu0 0.0
    %519 = vmatprep.subr.mxu0 0.0
    %520 = vmatpush1.msra.mxu0 0.0
    %521 = vmatprep.subr.mxu0 0.0
    %522 = vmatpush1.msra.mxu0 0.0
    %523 = vmatprep.subr.mxu0 0.0
    %524 = vmatpush1.msra.mxu0 0.0
    %525 = vmatprep.subr.mxu0 0.0
    %526 = vmatpush1.msra.mxu0 0.0
    %527 = vmatprep.subr.mxu0 0.0
    %528 = vmatpush1.msra.mxu0 0.0
    %529 = vmatprep.subr.mxu0 0.0
    %530 = vmatpush1.msra.mxu0 0.0
    %531 = vmatprep.subr.mxu0 0.0
    %532 = vmatpush1.msra.mxu0 0.0
    %533 = vmatprep.subr.mxu0 0.0
    %534 = vmatpush1.msra.mxu0 0.0
    %535 = vmatprep.subr.mxu0 0.0
    %536 = vmatpush1.msra.mxu0 0.0
    %537 = vmatprep.subr.mxu0 0.0
    %538 = vmatpush1.msra.mxu0 0.0
    %539 = vmatprep.subr.mxu0 0.0
    %540 = vmatpush1.msra.mxu0 %v422
    %541 = vmatprep.subr.mxu0 0.0
    %542 = vmatpush1.msra.mxu0 %v419
    %543 = vmatprep.subr.mxu0 0.0
    %544 = vmatpush1.msra.mxu0 %v416
    %545 = vmatprep.subr.mxu0 0.0
    %546 = vmatpush1.msra.mxu0 %v413
    %547 = vmatprep.subr.mxu0 0.0
    %548 = vmatpush2.msra.mxu0 0.0
    %549 = vmatprep.subr.mxu0 0.0
    %550 = vmatpush2.msra.mxu0 0.0
    %551 = vmatprep.subr.mxu0 0.0
    %552 = vmatpush2.msra.mxu0 0.0
    %553 = vmatprep.subr.mxu0 0.0
    %554 = vmatpush2.msra.mxu0 0.0
    %555 = vmatprep.subr.mxu0 0.0
    %556 = vmatpush2.msra.mxu0 0.0
    %557 = vmatprep.subr.mxu0 0.0
    %558 = vmatpush2.msra.mxu0 0.0
    %559 = vmatprep.subr.mxu0 0.0
    %560 = vmatpush2.msra.mxu0 0.0
    %561 = vmatprep.subr.mxu0 0.0
    %562 = vmatpush2.msra.mxu0 0.0
    %563 = vmatprep.subr.mxu0 0.0
    %564 = vmatpush2.msra.mxu0 0.0
    %565 = vmatprep.subr.mxu0 0.0
    %566 = vmatpush2.msra.mxu0 0.0
    %567 = vmatprep.subr.mxu0 0.0
    %568 = vmatpush2.msra.mxu0 0.0
    %569 = vmatprep.subr.mxu0 0.0
    %570 = vmatpush2.msra.mxu0 0.0
    %571 = vmatprep.subr.mxu0 0.0
    %572 = vmatpush2.msra.mxu0 0.0
    %573 = vmatprep.subr.mxu0 0.0
    %574 = vmatpush2.msra.mxu0 0.0
    %575 = vmatprep.subr.mxu0 0.0
    %576 = vmatpush2.msra.mxu0 0.0
    %577 = vmatprep.subr.mxu0 0.0
    %578 = vmatpush2.msra.mxu0 0.0
    %579 = vmatprep.mubr.f32.mxu0 0.0
    %580 = vmatmul.mubr.f32.gmra.mxu0 %v442
    %v581 = vpop.f32.mrf.mxu0
    %v582 = vadd.f32 %v436, %v581
    %v583 = vpop.f32.mrf.mxu0
    %584 = vdwg.mxu0
    %v585 = vmax.f32 %v511, 0.0
    %v586 = vmax.f32 %v513, 0.0
    %v587 = vmax.f32 %v582, 0.0
    %v588 = vld [vmem:[#allocation11] sm:$0xff]
    %v589 = vld [vmem:[#allocation11 + $0x8] sm:$0xff]
    %v590 = vld [vmem:[#allocation11 + $0x10] sm:$0xff]
    %v591 = vld [vmem:[#allocation11 + $0x18] sm:$0xff]
    %v592 = vld [vmem:[#allocation11 + $0x20] sm:$0xff]
    %v593 = vld [vmem:[#allocation11 + $0x28] sm:$0xff]
    %v594 = vld [vmem:[#allocation11 + $0x30] sm:$0xff]
    %v595 = vld [vmem:[#allocation11 + $0x38] sm:$0xff]
    %v596 = vld [vmem:[#allocation11 + $0x40] sm:$0xff]
    %v597 = vld [vmem:[#allocation11 + $0x48] sm:$0xff]
    %v598 = vld [vmem:[#allocation11 + $0x50] sm:$0xff]
    %v599 = vld [vmem:[#allocation11 + $0x58] sm:$0xff]
    %v600 = vld [vmem:[#allocation11 + $0x60] sm:$0xff]
    %v601 = vld [vmem:[#allocation11 + $0x68] sm:$0xff]
    %v602 = vld [vmem:[#allocation11 + $0x70] sm:$0xff]
    %v603 = vld [vmem:[#allocation11 + $0x78] sm:$0xff]
    %v604 = vld [vmem:[#allocation11 + $0x80] sm:$0xff]
    %v605 = vld [vmem:[#allocation11 + $0x88] sm:$0xff]
    %v606 = vld [vmem:[#allocation11 + $0x90] sm:$0xff]
    %v607 = vld [vmem:[#allocation11 + $0x98] sm:$0xff]
    %v608 = vld [vmem:[#allocation11 + $0xa0] sm:$0xff]
    %v609 = vld [vmem:[#allocation11 + $0xa8] sm:$0xff]
    %v610 = vld [vmem:[#allocation11 + $0xb0] sm:$0xff]
    %v611 = vld [vmem:[#allocation11 + $0xb8] sm:$0xff]
    %v612 = vld [vmem:[#allocation11 + $0xc0] sm:$0xff]
    %v613 = vld [vmem:[#allocation11 + $0xc8] sm:$0xff]
    %v614 = vld [vmem:[#allocation11 + $0xd0] sm:$0xff]
    %v615 = vld [vmem:[#allocation11 + $0xd8] sm:$0xff]
    %v616 = vld [vmem:[#allocation11 + $0xe0] sm:$0xff]
    %v617 = vld [vmem:[#allocation11 + $0xe8] sm:$0xff]
    %v618 = vld [vmem:[#allocation11 + $0xf0] sm:$0xff]
    %v619 = vld [vmem:[#allocation11 + $0xf8] sm:$0xff]
    %v620 = vld [vmem:[#allocation11 + $0x100] sm:$0xff]
    %v621 = vld [vmem:[#allocation11 + $0x108] sm:$0xff]
    %v622 = vld [vmem:[#allocation11 + $0x110] sm:$0xff]
    %v623 = vld [vmem:[#allocation11 + $0x118] sm:$0xff]
    %v624 = vld [vmem:[#allocation11 + $0x120] sm:$0xff]
    %v625 = vld [vmem:[#allocation11 + $0x128] sm:$0xff]
    %v626 = vld [vmem:[#allocation11 + $0x130] sm:$0xff]
    %v627 = vld [vmem:[#allocation11 + $0x138] sm:$0xff]
    %v628 = vld [vmem:[#allocation11 + $0x140] sm:$0xff]
    %v629 = vld [vmem:[#allocation11 + $0x148] sm:$0xff]
    %v630 = vld [vmem:[#allocation11 + $0x150] sm:$0xff]
    %v631 = vld [vmem:[#allocation11 + $0x158] sm:$0xff]
    %v632 = vld [vmem:[#allocation11 + $0x160] sm:$0xff]
    %v633 = vld [vmem:[#allocation11 + $0x168] sm:$0xff]
    %v634 = vld [vmem:[#allocation11 + $0x170] sm:$0xff]
    %v635 = vld [vmem:[#allocation11 + $0x178] sm:$0xff]
    %v636 = vld [vmem:[#allocation11 + $0x180] sm:$0xff]
    %v637 = vld [vmem:[#allocation11 + $0x188] sm:$0xff]
    %v638 = vld [vmem:[#allocation11 + $0x190] sm:$0xff]
    %v639 = vld [vmem:[#allocation11 + $0x198] sm:$0xff]
    %v640 = vld [vmem:[#allocation11 + $0x1a0] sm:$0xff]
    %v641 = vld [vmem:[#allocation11 + $0x1a8] sm:$0xff]
    %v642 = vld [vmem:[#allocation11 + $0x1b0] sm:$0xff]
    %v643 = vld [vmem:[#allocation11 + $0x1b8] sm:$0xff]
    %v644 = vld [vmem:[#allocation11 + $0x1c0] sm:$0xff]
    %v645 = vld [vmem:[#allocation11 + $0x1c8] sm:$0xff]
    %v646 = vld [vmem:[#allocation11 + $0x1d0] sm:$0xff]
    %v647 = vld [vmem:[#allocation11 + $0x1d8] sm:$0xff]
    %v648 = vld [vmem:[#allocation11 + $0x1e0] sm:$0xff]
    %v649 = vld [vmem:[#allocation11 + $0x1e8] sm:$0xff]
    %v650 = vld [vmem:[#allocation11 + $0x1f0] sm:$0xff]
    %v651 = vld [vmem:[#allocation11 + $0x1f8] sm:$0xff]
    %v652 = vld [vmem:[#allocation11 + $0x200] sm:$0xff]
    %v653 = vld [vmem:[#allocation11 + $0x208] sm:$0xff]
    %v654 = vld [vmem:[#allocation11 + $0x210] sm:$0xff]
    %v655 = vld [vmem:[#allocation11 + $0x218] sm:$0xff]
    %v656 = vld [vmem:[#allocation11 + $0x220] sm:$0xff]
    %v657 = vld [vmem:[#allocation11 + $0x228] sm:$0xff]
    %v658 = vld [vmem:[#allocation11 + $0x230] sm:$0xff]
    %v659 = vld [vmem:[#allocation11 + $0x238] sm:$0xff]
    %v660 = vld [vmem:[#allocation11 + $0x240] sm:$0xff]
    %v661 = vld [vmem:[#allocation11 + $0x248] sm:$0xff]
    %v662 = vld [vmem:[#allocation11 + $0x250] sm:$0xff]
    %v663 = vld [vmem:[#allocation11 + $0x258] sm:$0xff]
    %v664 = vld [vmem:[#allocation11 + $0x260] sm:$0xff]
    %v665 = vld [vmem:[#allocation11 + $0x268] sm:$0xff]
    %v666 = vld [vmem:[#allocation11 + $0x270] sm:$0xff]
    %v667 = vld [vmem:[#allocation11 + $0x278] sm:$0xff]
    %v668 = vld [vmem:[#allocation11 + $0x280] sm:$0xff]
    %v669 = vld [vmem:[#allocation11 + $0x288] sm:$0xff]
    %v670 = vld [vmem:[#allocation11 + $0x290] sm:$0xff]
    %v671 = vld [vmem:[#allocation11 + $0x298] sm:$0xff]
    %v672 = vld [vmem:[#allocation11 + $0x2a0] sm:$0xff]
    %v673 = vld [vmem:[#allocation11 + $0x2a8] sm:$0xff]
    %v674 = vld [vmem:[#allocation11 + $0x2b0] sm:$0xff]
    %v675 = vld [vmem:[#allocation11 + $0x2b8] sm:$0xff]
    %v676 = vld [vmem:[#allocation11 + $0x2c0] sm:$0xff]
    %v677 = vld [vmem:[#allocation11 + $0x2c8] sm:$0xff]
    %v678 = vld [vmem:[#allocation11 + $0x2d0] sm:$0xff]
    %v679 = vld [vmem:[#allocation11 + $0x2d8] sm:$0xff]
    %v680 = vld [vmem:[#allocation11 + $0x2e0] sm:$0xff]
    %v681 = vld [vmem:[#allocation11 + $0x2e8] sm:$0xff]
    %v682 = vld [vmem:[#allocation11 + $0x2f0] sm:$0xff]
    %v683 = vld [vmem:[#allocation11 + $0x2f8] sm:$0xff]
    %v684 = vld [vmem:[#allocation11 + $0x300] sm:$0xff]
    %v685 = vld [vmem:[#allocation11 + $0x308] sm:$0xff]
    %v686 = vld [vmem:[#allocation11 + $0x310] sm:$0xff]
    %v687 = vld [vmem:[#allocation11 + $0x318] sm:$0xff]
    %v688 = vld [vmem:[#allocation11 + $0x320] sm:$0xff]
    %v689 = vld [vmem:[#allocation11 + $0x328] sm:$0xff]
    %v690 = vld [vmem:[#allocation11 + $0x330] sm:$0xff]
    %v691 = vld [vmem:[#allocation11 + $0x338] sm:$0xff]
    %v692 = vld [vmem:[#allocation11 + $0x340] sm:$0xff]
    %v693 = vld [vmem:[#allocation11 + $0x348] sm:$0xff]
    %v694 = vld [vmem:[#allocation11 + $0x350] sm:$0xff]
    %v695 = vld [vmem:[#allocation11 + $0x358] sm:$0xff]
    %v696 = vld [vmem:[#allocation11 + $0x360] sm:$0xff]
    %v697 = vld [vmem:[#allocation11 + $0x368] sm:$0xff]
    %v698 = vld [vmem:[#allocation11 + $0x370] sm:$0xff]
    %v699 = vld [vmem:[#allocation11 + $0x378] sm:$0xff]
    %v700 = vld [vmem:[#allocation11 + $0x380] sm:$0xff]
    %v701 = vld [vmem:[#allocation11 + $0x388] sm:$0xff]
    %v702 = vld [vmem:[#allocation11 + $0x390] sm:$0xff]
    %v703 = vld [vmem:[#allocation11 + $0x398] sm:$0xff]
    %v704 = vld [vmem:[#allocation11 + $0x3a0] sm:$0xff]
    %v705 = vld [vmem:[#allocation11 + $0x3a8] sm:$0xff]
    %v706 = vld [vmem:[#allocation11 + $0x3b0] sm:$0xff]
    %v707 = vld [vmem:[#allocation11 + $0x3b8] sm:$0xff]
    %v708 = vld [vmem:[#allocation11 + $0x3c0] sm:$0xff]
    %v709 = vld [vmem:[#allocation11 + $0x3c8] sm:$0xff]
    %v710 = vld [vmem:[#allocation11 + $0x3d0] sm:$0xff]
    %v711 = vld [vmem:[#allocation11 + $0x3d8] sm:$0xff]
    %v712 = vld [vmem:[#allocation11 + $0x3e0] sm:$0xff]
    %v713 = vld [vmem:[#allocation11 + $0x3e8] sm:$0xff]
    %v714 = vld [vmem:[#allocation11 + $0x3f0] sm:$0xff]
    %v715 = vld [vmem:[#allocation11 + $0x3f8] sm:$0xff]
    %v716 = vld [vmem:[#allocation11 + $0x400] sm:$0xff]
    %v717 = vld [vmem:[#allocation11 + $0x408] sm:$0xff]
    %v718 = vld [vmem:[#allocation11 + $0x410] sm:$0xff]
    %v719 = vld [vmem:[#allocation11 + $0x418] sm:$0xff]
    %v720 = vld [vmem:[#allocation11 + $0x420] sm:$0xff]
    %v721 = vld [vmem:[#allocation11 + $0x428] sm:$0xff]
    %v722 = vld [vmem:[#allocation11 + $0x430] sm:$0xff]
    %v723 = vld [vmem:[#allocation11 + $0x438] sm:$0xff]
    %v724 = vld [vmem:[#allocation11 + $0x440] sm:$0xff]
    %v725 = vld [vmem:[#allocation11 + $0x448] sm:$0xff]
    %v726 = vld [vmem:[#allocation11 + $0x450] sm:$0xff]
    %v727 = vld [vmem:[#allocation11 + $0x458] sm:$0xff]
    %v728 = vld [vmem:[#allocation11 + $0x460] sm:$0xff]
    %v729 = vld [vmem:[#allocation11 + $0x468] sm:$0xff]
    %v730 = vld [vmem:[#allocation11 + $0x470] sm:$0xff]
    %v731 = vld [vmem:[#allocation11 + $0x478] sm:$0xff]
    %v732 = vld [vmem:[%s6] sm:$0x7]
    %v734 = vlaneseq
    %v735 = vshrl.u32 %v734, 7
    %v736 = vsub.s32 0, %v735
    %v737 = vrot.slane %v732, %v736
    %v738 = vlaneseq
    %v739 = vshrl.u32 %v738, 7
    %v740 = vsub.s32 1, %v739
    %v741 = vrot.slane %v732, %v740
    %v742 = vlaneseq
    %v743 = vshrl.u32 %v742, 7
    %v744 = vsub.s32 2, %v743
    %v745 = vrot.slane %v732, %v744
    %749 = vmatprep.subr.mxu0 %v634
    %750 = vmatpush1.msra.mxu0 %v633
    %751 = vmatprep.subr.mxu0 %v631
    %752 = vmatpush1.msra.mxu0 %v630
    %753 = vmatprep.subr.mxu0 %v628
    %754 = vmatpush1.msra.mxu0 %v627
    %755 = vmatprep.subr.mxu0 %v625
    %756 = vmatpush1.msra.mxu0 %v624
    %757 = vmatprep.subr.mxu0 %v622
    %758 = vmatpush1.msra.mxu0 %v621
    %759 = vmatprep.subr.mxu0 %v619
    %760 = vmatpush1.msra.mxu0 %v618
    %761 = vmatprep.subr.mxu0 %v616
    %762 = vmatpush1.msra.mxu0 %v615
    %763 = vmatprep.subr.mxu0 %v613
    %764 = vmatpush1.msra.mxu0 %v612
    %765 = vmatprep.subr.mxu0 %v610
    %766 = vmatpush1.msra.mxu0 %v609
    %767 = vmatprep.subr.mxu0 %v607
    %768 = vmatpush1.msra.mxu0 %v606
    %769 = vmatprep.subr.mxu0 %v604
    %770 = vmatpush1.msra.mxu0 %v603
    %771 = vmatprep.subr.mxu0 %v601
    %772 = vmatpush1.msra.mxu0 %v600
    %773 = vmatprep.subr.mxu0 %v598
    %774 = vmatpush1.msra.mxu0 %v597
    %775 = vmatprep.subr.mxu0 %v595
    %776 = vmatpush1.msra.mxu0 %v594
    %777 = vmatprep.subr.mxu0 %v592
    %778 = vmatpush1.msra.mxu0 %v591
    %779 = vmatprep.subr.mxu0 %v589
    %780 = vmatpush1.msra.mxu0 %v588
    %781 = vmatprep.subr.mxu0 %v682
    %782 = vmatpush2.msra.mxu0 %v681
    %783 = vmatprep.subr.mxu0 %v679
    %784 = vmatpush2.msra.mxu0 %v678
    %785 = vmatprep.subr.mxu0 %v676
    %786 = vmatpush2.msra.mxu0 %v675
    %787 = vmatprep.subr.mxu0 %v673
    %788 = vmatpush2.msra.mxu0 %v672
    %789 = vmatprep.subr.mxu0 %v670
    %790 = vmatpush2.msra.mxu0 %v669
    %791 = vmatprep.subr.mxu0 %v667
    %792 = vmatpush2.msra.mxu0 %v666
    %793 = vmatprep.subr.mxu0 %v664
    %794 = vmatpush2.msra.mxu0 %v663
    %795 = vmatprep.subr.mxu0 %v661
    %796 = vmatpush2.msra.mxu0 %v660
    %797 = vmatprep.subr.mxu0 %v658
    %798 = vmatpush2.msra.mxu0 %v657
    %799 = vmatprep.subr.mxu0 %v655
    %800 = vmatpush2.msra.mxu0 %v654
    %801 = vmatprep.subr.mxu0 %v652
    %802 = vmatpush2.msra.mxu0 %v651
    %803 = vmatprep.subr.mxu0 %v649
    %804 = vmatpush2.msra.mxu0 %v648
    %805 = vmatprep.subr.mxu0 %v646
    %806 = vmatpush2.msra.mxu0 %v645
    %807 = vmatprep.subr.mxu0 %v643
    %808 = vmatpush2.msra.mxu0 %v642
    %809 = vmatprep.subr.mxu0 %v640
    %810 = vmatpush2.msra.mxu0 %v639
    %811 = vmatprep.subr.mxu0 %v637
    %812 = vmatpush2.msra.mxu0 %v636
    %813 = vmatprep.mubr.f32.mxu0 %v586
    %814 = vmatmul.mubr.f32.gmra.mxu0 %v585
    %v815 = vpop.f32.mrf.mxu0
    %v816 = vadd.f32 %v737, %v815
    %v817 = vpop.f32.mrf.mxu0
    %v818 = vadd.f32 %v741, %v817
    %819 = vdwg.mxu0
    %820 = vmatprep.subr.mxu0 %v730
    %821 = vmatpush1.msra.mxu0 %v729
    %822 = vmatprep.subr.mxu0 %v727
    %823 = vmatpush1.msra.mxu0 %v726
    %824 = vmatprep.subr.mxu0 %v724
    %825 = vmatpush1.msra.mxu0 %v723
    %826 = vmatprep.subr.mxu0 %v721
    %827 = vmatpush1.msra.mxu0 %v720
    %828 = vmatprep.subr.mxu0 %v718
    %829 = vmatpush1.msra.mxu0 %v717
    %830 = vmatprep.subr.mxu0 %v715
    %831 = vmatpush1.msra.mxu0 %v714
    %832 = vmatprep.subr.mxu0 %v712
    %833 = vmatpush1.msra.mxu0 %v711
    %834 = vmatprep.subr.mxu0 %v709
    %835 = vmatpush1.msra.mxu0 %v708
    %836 = vmatprep.subr.mxu0 %v706
    %837 = vmatpush1.msra.mxu0 %v705
    %838 = vmatprep.subr.mxu0 %v703
    %839 = vmatpush1.msra.mxu0 %v702
    %840 = vmatprep.subr.mxu0 %v700
    %841 = vmatpush1.msra.mxu0 %v699
    %842 = vmatprep.subr.mxu0 %v697
    %843 = vmatpush1.msra.mxu0 %v696
    %844 = vmatprep.subr.mxu0 %v694
    %845 = vmatpush1.msra.mxu0 %v693
    %846 = vmatprep.subr.mxu0 %v691
    %847 = vmatpush1.msra.mxu0 %v690
    %848 = vmatprep.subr.mxu0 %v688
    %849 = vmatpush1.msra.mxu0 %v687
    %850 = vmatprep.subr.mxu0 %v685
    %851 = vmatpush1.msra.mxu0 %v684
    %852 = vmatprep.subr.mxu0 0.0
    %853 = vmatpush2.msra.mxu0 0.0
    %854 = vmatprep.subr.mxu0 0.0
    %855 = vmatpush2.msra.mxu0 0.0
    %856 = vmatprep.subr.mxu0 0.0
    %857 = vmatpush2.msra.mxu0 0.0
    %858 = vmatprep.subr.mxu0 0.0
    %859 = vmatpush2.msra.mxu0 0.0
    %860 = vmatprep.subr.mxu0 0.0
    %861 = vmatpush2.msra.mxu0 0.0
    %862 = vmatprep.subr.mxu0 0.0
    %863 = vmatpush2.msra.mxu0 0.0
    %864 = vmatprep.subr.mxu0 0.0
    %865 = vmatpush2.msra.mxu0 0.0
    %866 = vmatprep.subr.mxu0 0.0
    %867 = vmatpush2.msra.mxu0 0.0
    %868 = vmatprep.subr.mxu0 0.0
    %869 = vmatpush2.msra.mxu0 0.0
    %870 = vmatprep.subr.mxu0 0.0
    %871 = vmatpush2.msra.mxu0 0.0
    %872 = vmatprep.subr.mxu0 0.0
    %873 = vmatpush2.msra.mxu0 0.0
    %874 = vmatprep.subr.mxu0 0.0
    %875 = vmatpush2.msra.mxu0 0.0
    %876 = vmatprep.subr.mxu0 0.0
    %877 = vmatpush2.msra.mxu0 0.0
    %878 = vmatprep.subr.mxu0 0.0
    %879 = vmatpush2.msra.mxu0 0.0
    %880 = vmatprep.subr.mxu0 0.0
    %881 = vmatpush2.msra.mxu0 0.0
    %882 = vmatprep.subr.mxu0 0.0
    %883 = vmatpush2.msra.mxu0 0.0
    %884 = vmatprep.mubr.f32.mxu0 0.0
    %885 = vmatmul.mubr.f32.gmra.mxu0 %v587
    %v886 = vpop.f32.mrf.mxu0
    %v887 = vadd.f32 %v816, %v886
    %v888 = vpop.f32.mrf.mxu0
    %v889 = vadd.f32 %v818, %v888
    %890 = vdwg.mxu0
    %891 = vmatprep.subr.mxu0 0.0
    %892 = vmatpush1.msra.mxu0 %v635
    %893 = vmatprep.subr.mxu0 0.0
    %894 = vmatpush1.msra.mxu0 %v632
    %895 = vmatprep.subr.mxu0 0.0
    %896 = vmatpush1.msra.mxu0 %v629
    %897 = vmatprep.subr.mxu0 0.0
    %898 = vmatpush1.msra.mxu0 %v626
    %899 = vmatprep.subr.mxu0 0.0
    %900 = vmatpush1.msra.mxu0 %v623
    %901 = vmatprep.subr.mxu0 0.0
    %902 = vmatpush1.msra.mxu0 %v620
    %903 = vmatprep.subr.mxu0 0.0
    %904 = vmatpush1.msra.mxu0 %v617
    %905 = vmatprep.subr.mxu0 0.0
    %906 = vmatpush1.msra.mxu0 %v614
    %907 = vmatprep.subr.mxu0 0.0
    %908 = vmatpush1.msra.mxu0 %v611
    %909 = vmatprep.subr.mxu0 0.0
    %910 = vmatpush1.msra.mxu0 %v608
    %911 = vmatprep.subr.mxu0 0.0
    %912 = vmatpush1.msra.mxu0 %v605
    %913 = vmatprep.subr.mxu0 0.0
    %914 = vmatpush1.msra.mxu0 %v602
    %915 = vmatprep.subr.mxu0 0.0
    %916 = vmatpush1.msra.mxu0 %v599
    %917 = vmatprep.subr.mxu0 0.0
    %918 = vmatpush1.msra.mxu0 %v596
    %919 = vmatprep.subr.mxu0 0.0
    %920 = vmatpush1.msra.mxu0 %v593
    %921 = vmatprep.subr.mxu0 0.0
    %922 = vmatpush1.msra.mxu0 %v590
    %923 = vmatprep.subr.mxu0 0.0
    %924 = vmatpush2.msra.mxu0 %v683
    %925 = vmatprep.subr.mxu0 0.0
    %926 = vmatpush2.msra.mxu0 %v680
    %927 = vmatprep.subr.mxu0 0.0
    %928 = vmatpush2.msra.mxu0 %v677
    %929 = vmatprep.subr.mxu0 0.0
    %930 = vmatpush2.msra.mxu0 %v674
    %931 = vmatprep.subr.mxu0 0.0
    %932 = vmatpush2.msra.mxu0 %v671
    %933 = vmatprep.subr.mxu0 0.0
    %934 = vmatpush2.msra.mxu0 %v668
    %935 = vmatprep.subr.mxu0 0.0
    %936 = vmatpush2.msra.mxu0 %v665
    %937 = vmatprep.subr.mxu0 0.0
    %938 = vmatpush2.msra.mxu0 %v662
    %939 = vmatprep.subr.mxu0 0.0
    %940 = vmatpush2.msra.mxu0 %v659
    %941 = vmatprep.subr.mxu0 0.0
    %942 = vmatpush2.msra.mxu0 %v656
    %943 = vmatprep.subr.mxu0 0.0
    %944 = vmatpush2.msra.mxu0 %v653
    %945 = vmatprep.subr.mxu0 0.0
    %946 = vmatpush2.msra.mxu0 %v650
    %947 = vmatprep.subr.mxu0 0.0
    %948 = vmatpush2.msra.mxu0 %v647
    %949 = vmatprep.subr.mxu0 0.0
    %950 = vmatpush2.msra.mxu0 %v644
    %951 = vmatprep.subr.mxu0 0.0
    %952 = vmatpush2.msra.mxu0 %v641
    %953 = vmatprep.subr.mxu0 0.0
    %954 = vmatpush2.msra.mxu0 %v638
    %955 = vmatprep.mubr.f32.mxu0 %v586
    %956 = vmatmul.mubr.f32.gmra.mxu0 %v585
    %v957 = vpop.f32.mrf.mxu0
    %v958 = vadd.f32 %v745, %v957
    %v959 = vpop.f32.mrf.mxu0
    %960 = vdwg.mxu0
    %961 = vmatprep.subr.mxu0 0.0
    %962 = vmatpush1.msra.mxu0 %v731
    %963 = vmatprep.subr.mxu0 0.0
    %964 = vmatpush1.msra.mxu0 %v728
    %965 = vmatprep.subr.mxu0 0.0
    %966 = vmatpush1.msra.mxu0 %v725
    %967 = vmatprep.subr.mxu0 0.0
    %968 = vmatpush1.msra.mxu0 %v722
    %969 = vmatprep.subr.mxu0 0.0
    %970 = vmatpush1.msra.mxu0 %v719
    %971 = vmatprep.subr.mxu0 0.0
    %972 = vmatpush1.msra.mxu0 %v716
    %973 = vmatprep.subr.mxu0 0.0
    %974 = vmatpush1.msra.mxu0 %v713
    %975 = vmatprep.subr.mxu0 0.0
    %976 = vmatpush1.msra.mxu0 %v710
    %977 = vmatprep.subr.mxu0 0.0
    %978 = vmatpush1.msra.mxu0 %v707
    %979 = vmatprep.subr.mxu0 0.0
    %980 = vmatpush1.msra.mxu0 %v704
    %981 = vmatprep.subr.mxu0 0.0
    %982 = vmatpush1.msra.mxu0 %v701
    %983 = vmatprep.subr.mxu0 0.0
    %984 = vmatpush1.msra.mxu0 %v698
    %985 = vmatprep.subr.mxu0 0.0
    %986 = vmatpush1.msra.mxu0 %v695
    %987 = vmatprep.subr.mxu0 0.0
    %988 = vmatpush1.msra.mxu0 %v692
    %989 = vmatprep.subr.mxu0 0.0
    %990 = vmatpush1.msra.mxu0 %v689
    %991 = vmatprep.subr.mxu0 0.0
    %992 = vmatpush1.msra.mxu0 %v686
    %993 = vmatprep.subr.mxu0 0.0
    %994 = vmatpush2.msra.mxu0 0.0
    %995 = vmatprep.subr.mxu0 0.0
    %996 = vmatpush2.msra.mxu0 0.0
    %997 = vmatprep.subr.mxu0 0.0
    %998 = vmatpush2.msra.mxu0 0.0
    %999 = vmatprep.subr.mxu0 0.0
    %1000 = vmatpush2.msra.mxu0 0.0
    %1001 = vmatprep.subr.mxu0 0.0
    %1002 = vmatpush2.msra.mxu0 0.0
    %1003 = vmatprep.subr.mxu0 0.0
    %1004 = vmatpush2.msra.mxu0 0.0
    %1005 = vmatprep.subr.mxu0 0.0
    %1006 = vmatpush2.msra.mxu0 0.0
    %1007 = vmatprep.subr.mxu0 0.0
    %1008 = vmatpush2.msra.mxu0 0.0
    %1009 = vmatprep.subr.mxu0 0.0
    %1010 = vmatpush2.msra.mxu0 0.0
    %1011 = vmatprep.subr.mxu0 0.0
    %1012 = vmatpush2.msra.mxu0 0.0
    %1013 = vmatprep.subr.mxu0 0.0
    %1014 = vmatpush2.msra.mxu0 0.0
    %1015 = vmatprep.subr.mxu0 0.0
    %1016 = vmatpush2.msra.mxu0 0.0
    %1017 = vmatprep.subr.mxu0 0.0
    %1018 = vmatpush2.msra.mxu0 0.0
    %1019 = vmatprep.subr.mxu0 0.0
    %1020 = vmatpush2.msra.mxu0 0.0
    %1021 = vmatprep.subr.mxu0 0.0
    %1022 = vmatpush2.msra.mxu0 0.0
    %1023 = vmatprep.subr.mxu0 0.0
    %1024 = vmatpush2.msra.mxu0 0.0
    %1025 = vmatprep.mubr.f32.mxu0 0.0
    %1026 = vmatmul.mubr.f32.gmra.mxu0 %v587
    %v1027 = vpop.f32.mrf.mxu0
    %v1028 = vadd.f32 %v958, %v1027
    %v1029 = vpop.f32.mrf.mxu0
    %1030 = vdwg.mxu0
    %v1031 = vmax.f32 %v887, 0.0
    %v1032 = vmax.f32 %v889, 0.0
    %v1033 = vmax.f32 %v1028, 0.0
    %v1034 = vld [vmem:[#allocation13] sm:$0xff]
    %v1035 = vld [vmem:[#allocation13 + $0x8] sm:$0xff]
    %v1036 = vld [vmem:[#allocation13 + $0x10] sm:$0xff]
    %v1037 = vld [vmem:[#allocation13 + $0x18] sm:$0xff]
    %v1038 = vld [vmem:[#allocation13 + $0x20] sm:$0xff]
    %v1039 = vld [vmem:[#allocation13 + $0x28] sm:$0xff]
    %v1040 = vld [vmem:[#allocation13 + $0x30] sm:$0xff]
    %v1041 = vld [vmem:[#allocation13 + $0x38] sm:$0xff]
    %v1042 = vld [vmem:[#allocation13 + $0x40] sm:$0xff]
    %v1043 = vld [vmem:[#allocation13 + $0x48] sm:$0xff]
    %v1044 = vld [vmem:[#allocation13 + $0x50] sm:$0xff]
    %v1045 = vld [vmem:[#allocation13 + $0x58] sm:$0xff]
    %v1046 = vld [vmem:[#allocation13 + $0x60] sm:$0xff]
    %v1047 = vld [vmem:[#allocation13 + $0x68] sm:$0xff]
    %v1048 = vld [vmem:[#allocation13 + $0x70] sm:$0xff]
    %v1049 = vld [vmem:[#allocation13 + $0x78] sm:$0xff]
    %v1050 = vld [vmem:[#allocation13 + $0x80] sm:$0xff]
    %v1051 = vld [vmem:[#allocation13 + $0x88] sm:$0xff]
    %v1052 = vld [vmem:[#allocation13 + $0x90] sm:$0xff]
    %v1053 = vld [vmem:[#allocation13 + $0x98] sm:$0xff]
    %v1054 = vld [vmem:[#allocation13 + $0xa0] sm:$0xff]
    %v1055 = vld [vmem:[#allocation13 + $0xa8] sm:$0xff]
    %v1056 = vld [vmem:[#allocation13 + $0xb0] sm:$0xff]
    %v1057 = vld [vmem:[#allocation13 + $0xb8] sm:$0xff]
    %v1058 = vld [vmem:[#allocation13 + $0xc0] sm:$0xff]
    %v1059 = vld [vmem:[#allocation13 + $0xc8] sm:$0xff]
    %v1060 = vld [vmem:[#allocation13 + $0xd0] sm:$0xff]
    %v1061 = vld [vmem:[#allocation13 + $0xd8] sm:$0xff]
    %v1062 = vld [vmem:[#allocation13 + $0xe0] sm:$0xff]
    %v1063 = vld [vmem:[#allocation13 + $0xe8] sm:$0xff]
    %v1064 = vld [vmem:[#allocation13 + $0xf0] sm:$0xff]
    %v1065 = vld [vmem:[#allocation13 + $0xf8] sm:$0xff]
    %v1066 = vld [vmem:[#allocation13 + $0x100] sm:$0xff]
    %v1067 = vld [vmem:[#allocation13 + $0x108] sm:$0xff]
    %v1068 = vld [vmem:[#allocation13 + $0x110] sm:$0xff]
    %v1069 = vld [vmem:[#allocation13 + $0x118] sm:$0xff]
    %v1070 = vld [vmem:[#allocation13 + $0x120] sm:$0xff]
    %v1071 = vld [vmem:[#allocation13 + $0x128] sm:$0xff]
    %v1072 = vld [vmem:[#allocation13 + $0x130] sm:$0xff]
    %v1073 = vld [vmem:[#allocation13 + $0x138] sm:$0xff]
    %v1074 = vld [vmem:[#allocation13 + $0x140] sm:$0xff]
    %v1075 = vld [vmem:[#allocation13 + $0x148] sm:$0xff]
    %v1076 = vld [vmem:[#allocation13 + $0x150] sm:$0xff]
    %v1077 = vld [vmem:[#allocation13 + $0x158] sm:$0xff]
    %v1078 = vld [vmem:[#allocation13 + $0x160] sm:$0xff]
    %v1079 = vld [vmem:[#allocation13 + $0x168] sm:$0xff]
    %v1080 = vld [vmem:[#allocation13 + $0x170] sm:$0xff]
    %v1081 = vld [vmem:[#allocation13 + $0x178] sm:$0xff]
    %v1082 = vld [vmem:[%s8] sm:$0x1]
    %v1084 = vlaneseq
    %v1085 = vshrl.u32 %v1084, 7
    %v1086 = vsub.s32 0, %v1085
    %v1087 = vrot.slane %v1082, %v1086
    %1089 = vmatprep.subr.mxu0 0.0
    %1090 = vmatpush1.msra.mxu0 %v1049
    %1091 = vmatprep.subr.mxu0 0.0
    %1092 = vmatpush1.msra.mxu0 %v1048
    %1093 = vmatprep.subr.mxu0 0.0
    %1094 = vmatpush1.msra.mxu0 %v1047
    %1095 = vmatprep.subr.mxu0 0.0
    %1096 = vmatpush1.msra.mxu0 %v1046
    %1097 = vmatprep.subr.mxu0 0.0
    %1098 = vmatpush1.msra.mxu0 %v1045
    %1099 = vmatprep.subr.mxu0 0.0
    %1100 = vmatpush1.msra.mxu0 %v1044
    %1101 = vmatprep.subr.mxu0 0.0
    %1102 = vmatpush1.msra.mxu0 %v1043
    %1103 = vmatprep.subr.mxu0 0.0
    %1104 = vmatpush1.msra.mxu0 %v1042
    %1105 = vmatprep.subr.mxu0 0.0
    %1106 = vmatpush1.msra.mxu0 %v1041
    %1107 = vmatprep.subr.mxu0 0.0
    %1108 = vmatpush1.msra.mxu0 %v1040
    %1109 = vmatprep.subr.mxu0 0.0
    %1110 = vmatpush1.msra.mxu0 %v1039
    %1111 = vmatprep.subr.mxu0 0.0
    %1112 = vmatpush1.msra.mxu0 %v1038
    %1113 = vmatprep.subr.mxu0 0.0
    %1114 = vmatpush1.msra.mxu0 %v1037
    %1115 = vmatprep.subr.mxu0 0.0
    %1116 = vmatpush1.msra.mxu0 %v1036
    %1117 = vmatprep.subr.mxu0 0.0
    %1118 = vmatpush1.msra.mxu0 %v1035
    %1119 = vmatprep.subr.mxu0 0.0
    %1120 = vmatpush1.msra.mxu0 %v1034
    %1121 = vmatprep.subr.mxu0 0.0
    %1122 = vmatpush2.msra.mxu0 %v1065
    %1123 = vmatprep.subr.mxu0 0.0
    %1124 = vmatpush2.msra.mxu0 %v1064
    %1125 = vmatprep.subr.mxu0 0.0
    %1126 = vmatpush2.msra.mxu0 %v1063
    %1127 = vmatprep.subr.mxu0 0.0
    %1128 = vmatpush2.msra.mxu0 %v1062
    %1129 = vmatprep.subr.mxu0 0.0
    %1130 = vmatpush2.msra.mxu0 %v1061
    %1131 = vmatprep.subr.mxu0 0.0
    %1132 = vmatpush2.msra.mxu0 %v1060
    %1133 = vmatprep.subr.mxu0 0.0
    %1134 = vmatpush2.msra.mxu0 %v1059
    %1135 = vmatprep.subr.mxu0 0.0
    %1136 = vmatpush2.msra.mxu0 %v1058
    %1137 = vmatprep.subr.mxu0 0.0
    %1138 = vmatpush2.msra.mxu0 %v1057
    %1139 = vmatprep.subr.mxu0 0.0
    %1140 = vmatpush2.msra.mxu0 %v1056
    %1141 = vmatprep.subr.mxu0 0.0
    %1142 = vmatpush2.msra.mxu0 %v1055
    %1143 = vmatprep.subr.mxu0 0.0
    %1144 = vmatpush2.msra.mxu0 %v1054
    %1145 = vmatprep.subr.mxu0 0.0
    %1146 = vmatpush2.msra.mxu0 %v1053
    %1147 = vmatprep.subr.mxu0 0.0
    %1148 = vmatpush2.msra.mxu0 %v1052
    %1149 = vmatprep.subr.mxu0 0.0
    %1150 = vmatpush2.msra.mxu0 %v1051
    %1151 = vmatprep.subr.mxu0 0.0
    %1152 = vmatpush2.msra.mxu0 %v1050
    %1153 = vmatprep.mubr.f32.mxu0 %v1032
    %1154 = vmatmul.mubr.f32.gmra.mxu0 %v1031
    %v1155 = vpop.f32.mrf.mxu0
    %v1156 = vadd.f32 %v1087, %v1155
    %v1157 = vpop.f32.mrf.mxu0
    %1158 = vdwg.mxu0
    %1159 = vmatprep.subr.mxu0 0.0
    %1160 = vmatpush1.msra.mxu0 %v1081
    %1161 = vmatprep.subr.mxu0 0.0
    %1162 = vmatpush1.msra.mxu0 %v1080
    %1163 = vmatprep.subr.mxu0 0.0
    %1164 = vmatpush1.msra.mxu0 %v1079
    %1165 = vmatprep.subr.mxu0 0.0
    %1166 = vmatpush1.msra.mxu0 %v1078
    %1167 = vmatprep.subr.mxu0 0.0
    %1168 = vmatpush1.msra.mxu0 %v1077
    %1169 = vmatprep.subr.mxu0 0.0
    %1170 = vmatpush1.msra.mxu0 %v1076
    %1171 = vmatprep.subr.mxu0 0.0
    %1172 = vmatpush1.msra.mxu0 %v1075
    %1173 = vmatprep.subr.mxu0 0.0
    %1174 = vmatpush1.msra.mxu0 %v1074
    %1175 = vmatprep.subr.mxu0 0.0
    %1176 = vmatpush1.msra.mxu0 %v1073
    %1177 = vmatprep.subr.mxu0 0.0
    %1178 = vmatpush1.msra.mxu0 %v1072
    %1179 = vmatprep.subr.mxu0 0.0
    %1180 = vmatpush1.msra.mxu0 %v1071
    %1181 = vmatprep.subr.mxu0 0.0
    %1182 = vmatpush1.msra.mxu0 %v1070
    %1183 = vmatprep.subr.mxu0 0.0
    %1184 = vmatpush1.msra.mxu0 %v1069
    %1185 = vmatprep.subr.mxu0 0.0
    %1186 = vmatpush1.msra.mxu0 %v1068
    %1187 = vmatprep.subr.mxu0 0.0
    %1188 = vmatpush1.msra.mxu0 %v1067
    %1189 = vmatprep.subr.mxu0 0.0
    %1190 = vmatpush1.msra.mxu0 %v1066
    %1191 = vmatprep.subr.mxu0 0.0
    %1192 = vmatpush2.msra.mxu0 0.0
    %1193 = vmatprep.subr.mxu0 0.0
    %1194 = vmatpush2.msra.mxu0 0.0
    %1195 = vmatprep.subr.mxu0 0.0
    %1196 = vmatpush2.msra.mxu0 0.0
    %1197 = vmatprep.subr.mxu0 0.0
    %1198 = vmatpush2.msra.mxu0 0.0
    %1199 = vmatprep.subr.mxu0 0.0
    %1200 = vmatpush2.msra.mxu0 0.0
    %1201 = vmatprep.subr.mxu0 0.0
    %1202 = vmatpush2.msra.mxu0 0.0
    %1203 = vmatprep.subr.mxu0 0.0
    %1204 = vmatpush2.msra.mxu0 0.0
    %1205 = vmatprep.subr.mxu0 0.0
    %1206 = vmatpush2.msra.mxu0 0.0
    %1207 = vmatprep.subr.mxu0 0.0
    %1208 = vmatpush2.msra.mxu0 0.0
    %1209 = vmatprep.subr.mxu0 0.0
    %1210 = vmatpush2.msra.mxu0 0.0
    %1211 = vmatprep.subr.mxu0 0.0
    %1212 = vmatpush2.msra.mxu0 0.0
    %1213 = vmatprep.subr.mxu0 0.0
    %1214 = vmatpush2.msra.mxu0 0.0
    %1215 = vmatprep.subr.mxu0 0.0
    %1216 = vmatpush2.msra.mxu0 0.0
    %1217 = vmatprep.subr.mxu0 0.0
    %1218 = vmatpush2.msra.mxu0 0.0
    %1219 = vmatprep.subr.mxu0 0.0
    %1220 = vmatpush2.msra.mxu0 0.0
    %1221 = vmatprep.subr.mxu0 0.0
    %1222 = vmatpush2.msra.mxu0 0.0
    %1223 = vmatprep.mubr.f32.mxu0 0.0
    %1224 = vmatmul.mubr.f32.gmra.mxu0 %v1033
    %v1225 = vpop.f32.mrf.mxu0
    %v1226 = vadd.f32 %v1156, %v1225
    %v1227 = vpop.f32.mrf.mxu0
    %1228 = vdwg.mxu0
    %1229 = vst [vmem:[#allocation14] sm:$0xff] %v1226
    // Predicated region
    $region62: #{tpu_custom_call.1} parent=1 // pred_check
      _
    $region63: #{tpu_custom_call.1} parent=1 // pred_check_branch
      %1231 = sbr.rel (0) target = $region65
    $region64: #{tpu_custom_call.1} parent=1 // pred_region
      %s1233 = ssub.s32 128, 128
      %1234 = vsyncadd [#allocation5], %s1233
      %s1236 = sshll.u32 [#allocation14], 4
      %s1237 = int_to_ptr.vmem [resolvable:$true] %s1236
      %1239 = dma.vmem_to_hbm [thread:$0]  %s1237, 128, %s9, [#allocation5]
    $region65: #{tpu_custom_call.1} parent=1 // pred_fallthru
      _
    // Predicated region
    $region66: #{tpu_custom_call.1} parent=1 // pred_check
      _
    $region67: #{tpu_custom_call.1} parent=1 // pred_check_branch
      %1241 = sbr.rel (0) target = $region69
    $region68: #{tpu_custom_call.1} parent=1 // pred_region
      %1242 = dma.done [#allocation5], 128
    $region69: #{tpu_custom_call.1} parent=1 // pred_fallthru
      _
    %1243 = vsyncpa [#allocation4], 1
    %1244 = vsyncpa [#allocation8], 1
    %1245 = vsyncpa [#allocation12], 1
    %1246 = vsyncpa [#allocation5], 1
    %1247 = vsyncpa [#allocation6], 1

</llo_original>
